<compile_context>
chip_gen: v7x
topology: tpu7x:2x2x1
jax: 0.10.0
libtpu: 0.0.40
codegen_flags: <defaults>
</compile_context>

<pallas_src>
import functools

import numpy as np

import jax
import jax.numpy as jnp
from jax.experimental import pallas as pl
from jax.experimental.pallas import tpu as pltpu

_EPS = 1e-5   # nn.BatchNorm3d default eps
_K = 5        # LUConv kernel size


def _round_up(x, m):
    return ((x + m - 1) // m) * m


def _pick_tm(m_total, target, min_grid=4):
    """Lane-tile width: multiple of 128, <= target, and small enough that the
    1-D grid has >= min_grid steps when possible (keeps both v7x TensorCores
    busy and preserves pipeline overlap)."""
    cap = max(128, -(-m_total // min_grid))
    return max(128, (min(target, cap) // 128) * 128)


def _elu(x):
    # ELU with an expm1-accurate negative branch (PyTorch uses expm1):
    #   expm1(x) = 2*t / (1 - t),   t = tanh(x/2)
    # tanh runs on the EUP and keeps full relative precision near x == 0,
    # unlike exp(x) - 1.  The positive branch of the select discards the
    # (possibly inf) value produced for large positive x.
    t = jnp.tanh(x * 0.5)
    return jnp.where(x > 0, x, (2.0 * t) / (1.0 - t))


def _tile_stats(v, i, tm, m_valid):
    """Packed per-tile BN partials over the lane axis of v: (C, tm) f32.

    Returns (1, C, 2) with [..., 0] = sum(v), [..., 1] = sum((v - tile_mean)^2)
    (centered, for a numerically stable parallel-variance merge in the wrapper).
    The ragged-tail mask is only generated when M % tm != 0.
    """
    if m_valid % tm == 0:
        s = jnp.sum(v, axis=1, keepdims=True)
        d = v - s * (1.0 / tm)
        m2 = jnp.sum(d * d, axis=1, keepdims=True)
    else:
        cnt = jnp.minimum(tm, m_valid - i * tm).astype(jnp.float32)
        col = i * tm + jax.lax.broadcasted_iota(jnp.int32, v.shape, 1)
        valid = col < m_valid
        vm = jnp.where(valid, v, 0.0)
        s = jnp.sum(vm, axis=1, keepdims=True)
        d = jnp.where(valid, v - s / cnt, 0.0)
        m2 = jnp.sum(d * d, axis=1, keepdims=True)
    return jnp.concatenate([s, m2], axis=1)[None]        # (1, C, 2)


# ---------- pass 1: im2col conv (one MXU matmul per tile) + BN1 partials ----------

def _conv_stats_kernel(w1_ref, p_ref, y_ref, st_ref, *, tm, m_valid):
    # w1_ref: (Cmid, Kpad)  conv weights, kernel-offset-major contraction rows
    # p_ref : (Kpad, TM)    im2col patches for this voxel tile
    # y_ref : (Cmid, TM)    conv output (channels on sublanes, voxels on lanes)
    # st_ref: (1, Cmid, 2)  packed per-tile (sum, centered-M2) BN1 partials
    y = jnp.dot(w1_ref[...], p_ref[...], preferred_element_type=jnp.float32)
    y_ref[...] = y.astype(y_ref.dtype)
    st_ref[...] = _tile_stats(y, pl.program_id(0), tm, m_valid)


# ---------- pass 2: BN1 affine + ELU (lane-dense, wide tiles) + BN2 partials ----------

def _bn_elu_stats_kernel(scale_ref, shift_ref, y_ref, z_ref, st_ref, *, tm, m_valid):
    z = _elu(y_ref[...].astype(jnp.float32) * scale_ref[...] + shift_ref[...])
    z_ref[...] = z.astype(z_ref.dtype)
    st_ref[...] = _tile_stats(z, pl.program_id(0), tm, m_valid)


# ---------- pass 3: BN2 affine + ELU + 1x1x1 segconv + softmax over classes ----------

def _head_kernel(scale_ref, shift_ref, w2_ref, b2_ref, z_ref, o_ref):
    a = _elu(z_ref[...].astype(jnp.float32) * scale_ref[...] + shift_ref[...])
    logits = jnp.dot(w2_ref[...], a, preferred_element_type=jnp.float32) + b2_ref[...]
    m = jnp.max(logits, axis=0, keepdims=True)            # sublane reduce (XLU)
    e = jnp.exp(logits - m)                                # padded classes -> 0
    o_ref[...] = (e / jnp.sum(e, axis=0, keepdims=True)).astype(o_ref.dtype)


def _merge_bn(st, counts, gamma, beta, m_total):
    """Stable parallel-variance merge of per-tile (sum, centered-M2) partials ->
    fused per-channel BN (scale, shift).  Biased variance, matching training-mode
    nn.BatchNorm3d forward normalization."""
    s = st[:, :, 0]                                        # (grid, C)
    m2 = st[:, :, 1]
    mean = jnp.sum(s, axis=0) / m_total                    # (C,)
    mean_t = s / counts[:, None]
    var = (jnp.sum(m2, axis=0)
           + jnp.sum(counts[:, None] * (mean_t - mean[None, :]) ** 2, axis=0)) / m_total
    inv = gamma.astype(jnp.float32) * jax.lax.rsqrt(var + _EPS)
    scale = inv[:, None]
    shift = beta.astype(jnp.float32)[:, None] - (mean * inv)[:, None]
    return scale, shift


def seghead_forward(x, params, *, tile_m1=2048, tile_m23=16384, use_bf16=True):
    """x: (N, inChans, D, H, W) float32 (NCDHW). Returns NCDHW softmax probs."""
    N, Cin, D, H, W = x.shape
    w1 = params["w1"]                      # (Cmid, Cin, 5, 5, 5)  PyTorch OIDHW
    Cmid = w1.shape[0]
    w2 = params["w2"]                      # (classes, Cmid, 1, 1, 1)
    classes = w2.shape[0]

    M = N * D * H * W
    Kcol = _K * _K * _K * Cin
    Kpad = _round_up(Kcol, 128)
    CLSP = max(8, _round_up(classes, 8))

    cdt = jnp.bfloat16 if use_bf16 else jnp.float32        # stream/MXU-input dtype

    tm1 = _pick_tm(M, tile_m1)
    tm23 = _pick_tm(M, tile_m23)
    g1 = pl.cdiv(M, tm1)
    g23 = pl.cdiv(M, tm23)

    # ---- layout plumbing (plain JAX), bf16 end-to-end on the fast path ----
    # Padded channel-first input (Cin, N, Dp, Hp, Wp): every 5x5x5 offset slab is
    # then already (Cin, M)-shaped, so the (Kpad, M) patch matrix is built
    # directly transposed with one concatenate (no extra pad/transpose passes
    # over the 125x-inflated slab).
    xp = jnp.transpose(
        jnp.pad(x.astype(cdt), ((0, 0), (0, 0), (2, 2), (2, 2), (2, 2))),
        (1, 0, 2, 3, 4))
    cols = [xp[:, :, kd:kd + D, kh:kh + H, kw:kw + W].reshape(Cin, M)
            for kd in range(_K) for kh in range(_K) for kw in range(_K)]
    if Kpad > Kcol:
        cols.append(jnp.zeros((Kpad - Kcol, M), cdt))       # free zero K-padding
    pT = jnp.concatenate(cols, axis=0)                       # (Kpad, M)

    w1k = jnp.transpose(w1, (2, 3, 4, 1, 0)).reshape(Kcol, Cmid)   # rows match pT
    w1T = jnp.pad(w1k, ((0, Kpad - Kcol), (0, 0))).T.astype(cdt)   # (Cmid, Kpad)
    # Conv bias b1 intentionally dropped: cancels exactly under training-mode BN.
    # Ragged-tail columns are masked in _tile_stats, so the BN statistics never
    # rely on pad columns being zero.

    cparams = pltpu.CompilerParams(dimension_semantics=("parallel",))

    # ---- pass 1: conv + packed BN1 partials ----
    y1, st1 = pl.pallas_call(
        functools.partial(_conv_stats_kernel, tm=tm1, m_valid=M),
        grid=(g1,),
        in_specs=[pl.BlockSpec((Cmid, Kpad), lambda i: (0, 0)),
                  pl.BlockSpec((Kpad, tm1), lambda i: (0, i))],
        out_specs=(pl.BlockSpec((Cmid, tm1), lambda i: (0, i)),
                   pl.BlockSpec((1, Cmid, 2), lambda i: (i, 0, 0))),
        out_shape=(jax.ShapeDtypeStruct((Cmid, M), cdt),
                   jax.ShapeDtypeStruct((g1, Cmid, 2), jnp.float32)),
        compiler_params=cparams,
    )(w1T, pT)

    counts1 = jnp.asarray(np.minimum(tm1, M - np.arange(g1) * tm1), jnp.float32)
    scale1, shift1 = _merge_bn(st1, counts1, params["g1"], params["be1"], M)

    # ---- pass 2: BN1 + ELU + packed BN2 partials (wide lane tiles) ----
    z, st2 = pl.pallas_call(
        functools.partial(_bn_elu_stats_kernel, tm=tm23, m_valid=M),
        grid=(g23,),
        in_specs=[pl.BlockSpec((Cmid, 1), lambda i: (0, 0)),
                  pl.BlockSpec((Cmid, 1), lambda i: (0, 0)),
                  pl.BlockSpec((Cmid, tm23), lambda i: (0, i))],
        out_specs=(pl.BlockSpec((Cmid, tm23), lambda i: (0, i)),
                   pl.BlockSpec((1, Cmid, 2), lambda i: (i, 0, 0))),
        out_shape=(jax.ShapeDtypeStruct((Cmid, M), cdt),
                   jax.ShapeDtypeStruct((g23, Cmid, 2), jnp.float32)),
        compiler_params=cparams,
    )(scale1, shift1, y1)

    counts2 = jnp.asarray(np.minimum(tm23, M - np.arange(g23) * tm23), jnp.float32)
    scale2, shift2 = _merge_bn(st2, counts2, params["g2"], params["be2"], M)

    # ---- pass 3: BN2 + ELU + segconv (1x1x1) + softmax ----
    w2p = jnp.pad(w2.reshape(classes, Cmid).astype(jnp.float32),
                  ((0, CLSP - classes), (0, 0)))
    # padded-class logits get -1e30 (f32 head) so exp() == 0 after the max shift
    b2p = jnp.pad(params["b2"].astype(jnp.float32), (0, CLSP - classes),
                  constant_values=-1e30).reshape(CLSP, 1)

    probsT = pl.pallas_call(
        _head_kernel,
        grid=(g23,),
        in_specs=[pl.BlockSpec((Cmid, 1), lambda i: (0, 0)),
                  pl.BlockSpec((Cmid, 1), lambda i: (0, 0)),
                  pl.BlockSpec((CLSP, Cmid), lambda i: (0, 0)),
                  pl.BlockSpec((CLSP, 1), lambda i: (0, 0)),
                  pl.BlockSpec((Cmid, tm23), lambda i: (0, i))],
        out_specs=pl.BlockSpec((CLSP, tm23), lambda i: (0, i)),
        out_shape=jax.ShapeDtypeStruct((CLSP, M), jnp.float32),
        compiler_params=cparams,
    )(scale2, shift2, w2p, b2p, z)

    probs = probsT[:classes].reshape(classes, N, D, H, W)
    return jnp.transpose(probs, (1, 0, 2, 3, 4))                   # NCDHW


def ref_seghead(x, params):
    """Pure-JAX reference with identical semantics (training-mode BN)."""
    w1, b1 = params["w1"], params["b1"]
    w2, b2 = params["w2"], params["b2"]

    y = jax.lax.conv_general_dilated(
        x, w1, window_strides=(1, 1, 1), padding=((2, 2), (2, 2), (2, 2)),
        dimension_numbers=("NCDHW", "OIDHW", "NCDHW"))
    y = y + b1[None, :, None, None, None]

    def bn(t, g, b):
        m = jnp.mean(t, axis=(0, 2, 3, 4), keepdims=True)
        v = jnp.mean((t - m) ** 2, axis=(0, 2, 3, 4), keepdims=True)
        return (t - m) / jnp.sqrt(v + _EPS) * g[None, :, None, None, None] \
               + b[None, :, None, None, None]

    elu = lambda t: jnp.where(t > 0, t, jnp.expm1(t))
    y = elu(bn(y, params["g1"], params["be1"]))
    y = elu(bn(y, params["g2"], params["be2"]))
    z = jnp.einsum("ncdhw,kc->nkdhw", y, w2.reshape(w2.shape[0], w2.shape[1]))
    z = z + b2[None, :, None, None, None]
    return jax.nn.softmax(z, axis=1)


def init_params(key, in_chans, interm_ngf, classes):
    ks = jax.random.split(key, 8)
    return dict(
        w1=0.1 * jax.random.normal(ks[0], (interm_ngf, in_chans, _K, _K, _K), jnp.float32),
        b1=0.05 * jax.random.normal(ks[1], (interm_ngf,), jnp.float32),
        g1=1.0 + 0.1 * jax.random.normal(ks[2], (interm_ngf,), jnp.float32),
        be1=0.1 * jax.random.normal(ks[3], (interm_ngf,), jnp.float32),
        g2=1.0 + 0.1 * jax.random.normal(ks[4], (interm_ngf,), jnp.float32),
        be2=0.1 * jax.random.normal(ks[5], (interm_ngf,), jnp.float32),
        w2=0.1 * jax.random.normal(ks[6], (classes, interm_ngf, 1, 1, 1), jnp.float32),
        b2=0.05 * jax.random.normal(ks[7], (classes,), jnp.float32),
    )


if __name__ == "__main__":
    key = jax.random.PRNGKey(0)
    kx, kp = jax.random.split(key)

    # small shapes consistent with the module: inChans=4, interm_ngf=8, classes=3
    N, Cin, D, H, W = 2, 4, 8, 8, 8
    interm_ngf, classes = 8, 3

    x = jax.random.normal(kx, (N, Cin, D, H, W), jnp.float32)
    params = init_params(kp, Cin, interm_ngf, classes)

    ref = ref_seghead(x, params)

    fwd_f32 = jax.jit(functools.partial(seghead_forward, use_bf16=False))
    fwd_bf16 = jax.jit(functools.partial(seghead_forward, use_bf16=True))

    # f32 fallback path: tight agreement with the f32 reference
    out = jax.block_until_ready(fwd_f32(x, params))
    assert out.shape == (N, classes, D, H, W)
    err_f32 = float(jnp.max(jnp.abs(out - ref)))
    assert err_f32 < 1e-3, err_f32

    # bf16 fast path (default on all generations incl. v5e): looser tolerance
    # due to bf16 patch/weight rounding and bf16 inter-pass intermediates.
    out_bf16 = jax.block_until_ready(fwd_bf16(x, params))
    err_bf16 = float(jnp.max(jnp.abs(out_bf16 - ref)))
    assert err_bf16 < 5e-2, err_bf16

    # softmax sanity: per-voxel channel probabilities sum to 1
    assert float(jnp.max(jnp.abs(jnp.sum(out, axis=1) - 1.0))) < 1e-4

    print("KERNEL_OK")
</pallas_src>

<mosaic_0001>
module attributes {stable_mosaic.version = 11 : i64} {
  func.func @_conv_stats_kernel(%arg0: i32, %arg1: memref<8x512xf32, #tpu.memory_space<vmem>>, %arg2: memref<512x256xf32, #tpu.memory_space<vmem>>, %arg3: memref<8x256xf32, #tpu.memory_space<vmem>>, %arg4: memref<1x8x2xf32, #tpu.memory_space<vmem>>) attributes {dimension_semantics = [#tpu.dimension_semantics<parallel>], iteration_bounds = array<i64: 4>, scalar_prefetch = 0 : i64, scratch_operands = 0 : i64, tpu.core_type = #tpu.core_type<tc>, window_params = [{pipeline_mode = #tpu.pipeline_mode<synchronous>, transform_indices = @transform_0, window_bounds = array<i64: 8, 512>}, {transform_indices = @transform_1, window_bounds = array<i64: 512, 256>}, {transform_indices = @transform_2, window_bounds = array<i64: 8, 256>}, {transform_indices = @transform_3, window_bounds = array<i64: 1, 8, 2>}]} {
    %c0 = arith.constant 0 : index
    %c0_0 = arith.constant 0 : index
    %0 = vector.load %arg1[%c0, %c0_0] : memref<8x512xf32, #tpu.memory_space<vmem>>, vector<8x512xf32>
    %c0_1 = arith.constant 0 : index
    %c0_2 = arith.constant 0 : index
    %1 = vector.load %arg2[%c0_1, %c0_2] : memref<512x256xf32, #tpu.memory_space<vmem>>, vector<512x256xf32>
    %cst = arith.constant dense<0.000000e+00> : vector<8x256xf32>
    %2 = tpu.matmul %0, %1, %cst {dimension_numbers = #tpu.dot_dimension_numbers<[1], [0], [0], [1], [0, 0, 1, 1], [], []>} : vector<8x512xf32>, vector<512x256xf32>, vector<8x256xf32> -> vector<8x256xf32>
    %c0_3 = arith.constant 0 : index
    %c0_4 = arith.constant 0 : index
    %3 = vector.load %arg3[%c0_3, %c0_4] : memref<8x256xf32, #tpu.memory_space<vmem>>, vector<8x256xf32>
    tpu.vector_store %arg3[%c0_3, %c0_4], %2 {strides = array<i32>} : memref<8x256xf32, #tpu.memory_space<vmem>>, vector<8x256xf32>,
    %cst_5 = arith.constant dense<0.000000e+00> : vector<8xf32>
    %4 = vector.multi_reduction <add>, %2, %cst_5 [1] : vector<8x256xf32> to vector<8xf32>
    %5 = vector.shape_cast %4 : vector<8xf32> to vector<8x1xf32>
    %cst_6 = arith.constant 3.906250e-03 : f32
    %6 = vector.broadcast %cst_6 : f32 to vector<8x1xf32>
    %7 = arith.mulf %5, %6 : vector<8x1xf32>
    %8 = vector.broadcast %7 : vector<8x1xf32> to vector<8x256xf32>
    %9 = arith.subf %2, %8 : vector<8x256xf32>
    %10 = arith.mulf %9, %9 : vector<8x256xf32>
    %cst_7 = arith.constant dense<0.000000e+00> : vector<8xf32>
    %11 = vector.multi_reduction <add>, %10, %cst_7 [1] : vector<8x256xf32> to vector<8xf32>
    %12 = vector.shape_cast %11 : vector<8xf32> to vector<8x1xf32>
    %13 = tpu.concatenate %5, %12 in 1 : vector<8x1xf32>, vector<8x1xf32> -> vector<8x2xf32>
    %14 = vector.shape_cast %13 : vector<8x2xf32> to vector<1x8x2xf32>
    %c0_8 = arith.constant 0 : index
    %c0_9 = arith.constant 0 : index
    %c0_10 = arith.constant 0 : index
    %15 = vector.load %arg4[%c0_8, %c0_9, %c0_10] : memref<1x8x2xf32, #tpu.memory_space<vmem>>, vector<1x8x2xf32>
    tpu.vector_store %arg4[%c0_8, %c0_9, %c0_10], %14 {strides = array<i32>} : memref<1x8x2xf32, #tpu.memory_space<vmem>>, vector<1x8x2xf32>,
    return
  }
  func.func @transform_0(%arg0: i32) -> (i32, i32) {
    %c0_i32 = arith.constant 0 : i32
    %c0_i32_0 = arith.constant 0 : i32
    %c0_i32_1 = arith.constant 0 : i32
    return %c0_i32, %c0_i32_0 : i32, i32
  }
  func.func @transform_1(%arg0: i32) -> (i32, i32) {
    %c0_i32 = arith.constant 0 : i32
    %c0_i32_0 = arith.constant 0 : i32
    return %c0_i32, %arg0 : i32, i32
  }
  func.func @transform_2(%arg0: i32) -> (i32, i32) {
    %c0_i32 = arith.constant 0 : i32
    %c0_i32_0 = arith.constant 0 : i32
    return %c0_i32, %arg0 : i32, i32
  }
  func.func @transform_3(%arg0: i32) -> (i32, i32, i32) {
    %c0_i32 = arith.constant 0 : i32
    %c0_i32_0 = arith.constant 0 : i32
    %c0_i32_1 = arith.constant 0 : i32
    return %arg0, %c0_i32, %c0_i32_0 : i32, i32, i32
  }
}

module attributes {stable_mosaic.version = 11 : i64} {
  func.func @_bn_elu_stats_kernel(%arg0: i32, %arg1: memref<8x1xf32, #tpu.memory_space<vmem>>, %arg2: memref<8x1xf32, #tpu.memory_space<vmem>>, %arg3: memref<8x256xf32, #tpu.memory_space<vmem>>, %arg4: memref<8x256xf32, #tpu.memory_space<vmem>>, %arg5: memref<1x8x2xf32, #tpu.memory_space<vmem>>) attributes {dimension_semantics = [#tpu.dimension_semantics<parallel>], iteration_bounds = array<i64: 4>, scalar_prefetch = 0 : i64, scratch_operands = 0 : i64, tpu.core_type = #tpu.core_type<tc>, window_params = [{pipeline_mode = #tpu.pipeline_mode<synchronous>, transform_indices = @transform_0, window_bounds = array<i64: 8, 1>}, {pipeline_mode = #tpu.pipeline_mode<synchronous>, transform_indices = @transform_1, window_bounds = array<i64: 8, 1>}, {transform_indices = @transform_2, window_bounds = array<i64: 8, 256>}, {transform_indices = @transform_3, window_bounds = array<i64: 8, 256>}, {transform_indices = @transform_4, window_bounds = array<i64: 1, 8, 2>}]} {
    %c0 = arith.constant 0 : index
    %c0_0 = arith.constant 0 : index
    %0 = vector.load %arg3[%c0, %c0_0] : memref<8x256xf32, #tpu.memory_space<vmem>>, vector<8x256xf32>
    %c0_1 = arith.constant 0 : index
    %c0_2 = arith.constant 0 : index
    %1 = vector.load %arg1[%c0_1, %c0_2] : memref<8x1xf32, #tpu.memory_space<vmem>>, vector<8x1xf32>
    %2 = vector.broadcast %1 : vector<8x1xf32> to vector<8x256xf32>
    %3 = arith.mulf %0, %2 : vector<8x256xf32>
    %c0_3 = arith.constant 0 : index
    %c0_4 = arith.constant 0 : index
    %4 = vector.load %arg2[%c0_3, %c0_4] : memref<8x1xf32, #tpu.memory_space<vmem>>, vector<8x1xf32>
    %5 = vector.broadcast %4 : vector<8x1xf32> to vector<8x256xf32>
    %6 = arith.addf %3, %5 : vector<8x256xf32>
    %cst = arith.constant 5.000000e-01 : f32
    %7 = vector.broadcast %cst : f32 to vector<8x256xf32>
    %8 = arith.mulf %6, %7 : vector<8x256xf32>
    %9 = math.tanh %8 : vector<8x256xf32>
    %cst_5 = arith.constant 0.000000e+00 : f32
    %10 = vector.broadcast %cst_5 : f32 to vector<8x256xf32>
    %11 = arith.cmpf ogt, %6, %10 : vector<8x256xf32>
    %cst_6 = arith.constant 2.000000e+00 : f32
    %12 = vector.broadcast %cst_6 : f32 to vector<8x256xf32>
    %13 = arith.mulf %12, %9 : vector<8x256xf32>
    %cst_7 = arith.constant 1.000000e+00 : f32
    %14 = vector.broadcast %cst_7 : f32 to vector<8x256xf32>
    %15 = arith.subf %14, %9 : vector<8x256xf32>
    %16 = arith.divf %13, %15 : vector<8x256xf32>
    %17 = arith.select %11, %6, %16 : vector<8x256xi1>, vector<8x256xf32>
    %c0_8 = arith.constant 0 : index
    %c0_9 = arith.constant 0 : index
    %18 = vector.load %arg4[%c0_8, %c0_9] : memref<8x256xf32, #tpu.memory_space<vmem>>, vector<8x256xf32>
    tpu.vector_store %arg4[%c0_8, %c0_9], %17 {strides = array<i32>} : memref<8x256xf32, #tpu.memory_space<vmem>>, vector<8x256xf32>,
    %cst_10 = arith.constant dense<0.000000e+00> : vector<8xf32>
    %19 = vector.multi_reduction <add>, %17, %cst_10 [1] : vector<8x256xf32> to vector<8xf32>
    %20 = vector.shape_cast %19 : vector<8xf32> to vector<8x1xf32>
    %cst_11 = arith.constant 3.906250e-03 : f32
    %21 = vector.broadcast %cst_11 : f32 to vector<8x1xf32>
    %22 = arith.mulf %20, %21 : vector<8x1xf32>
    %23 = vector.broadcast %22 : vector<8x1xf32> to vector<8x256xf32>
    %24 = arith.subf %17, %23 : vector<8x256xf32>
    %25 = arith.mulf %24, %24 : vector<8x256xf32>
    %cst_12 = arith.constant dense<0.000000e+00> : vector<8xf32>
    %26 = vector.multi_reduction <add>, %25, %cst_12 [1] : vector<8x256xf32> to vector<8xf32>
    %27 = vector.shape_cast %26 : vector<8xf32> to vector<8x1xf32>
    %28 = tpu.concatenate %20, %27 in 1 : vector<8x1xf32>, vector<8x1xf32> -> vector<8x2xf32>
    %29 = vector.shape_cast %28 : vector<8x2xf32> to vector<1x8x2xf32>
    %c0_13 = arith.constant 0 : index
    %c0_14 = arith.constant 0 : index
    %c0_15 = arith.constant 0 : index
    %30 = vector.load %arg5[%c0_13, %c0_14, %c0_15] : memref<1x8x2xf32, #tpu.memory_space<vmem>>, vector<1x8x2xf32>
    tpu.vector_store %arg5[%c0_13, %c0_14, %c0_15], %29 {strides = array<i32>} : memref<1x8x2xf32, #tpu.memory_space<vmem>>, vector<1x8x2xf32>,
    return
  }
  func.func @transform_0(%arg0: i32) -> (i32, i32) {
    %c0_i32 = arith.constant 0 : i32
    %c0_i32_0 = arith.constant 0 : i32
    %c0_i32_1 = arith.constant 0 : i32
    return %c0_i32, %c0_i32_0 : i32, i32
  }
  func.func @transform_1(%arg0: i32) -> (i32, i32) {
    %c0_i32 = arith.constant 0 : i32
    %c0_i32_0 = arith.constant 0 : i32
    %c0_i32_1 = arith.constant 0 : i32
    return %c0_i32, %c0_i32_0 : i32, i32
  }
  func.func @transform_2(%arg0: i32) -> (i32, i32) {
    %c0_i32 = arith.constant 0 : i32
    %c0_i32_0 = arith.constant 0 : i32
    return %c0_i32, %arg0 : i32, i32
  }
  func.func @transform_3(%arg0: i32) -> (i32, i32) {
    %c0_i32 = arith.constant 0 : i32
    %c0_i32_0 = arith.constant 0 : i32
    return %c0_i32, %arg0 : i32, i32
  }
  func.func @transform_4(%arg0: i32) -> (i32, i32, i32) {
    %c0_i32 = arith.constant 0 : i32
    %c0_i32_0 = arith.constant 0 : i32
    %c0_i32_1 = arith.constant 0 : i32
    return %arg0, %c0_i32, %c0_i32_0 : i32, i32, i32
  }
}

module attributes {stable_mosaic.version = 11 : i64} {
  func.func @_head_kernel(%arg0: i32, %arg1: memref<8x1xf32, #tpu.memory_space<vmem>>, %arg2: memref<8x1xf32, #tpu.memory_space<vmem>>, %arg3: memref<8x8xf32, #tpu.memory_space<vmem>>, %arg4: memref<8x1xf32, #tpu.memory_space<vmem>>, %arg5: memref<8x256xf32, #tpu.memory_space<vmem>>, %arg6: memref<8x256xf32, #tpu.memory_space<vmem>>) attributes {dimension_semantics = [#tpu.dimension_semantics<parallel>], iteration_bounds = array<i64: 4>, scalar_prefetch = 0 : i64, scratch_operands = 0 : i64, tpu.core_type = #tpu.core_type<tc>, window_params = [{pipeline_mode = #tpu.pipeline_mode<synchronous>, transform_indices = @transform_0, window_bounds = array<i64: 8, 1>}, {pipeline_mode = #tpu.pipeline_mode<synchronous>, transform_indices = @transform_1, window_bounds = array<i64: 8, 1>}, {pipeline_mode = #tpu.pipeline_mode<synchronous>, transform_indices = @transform_2, window_bounds = array<i64: 8, 8>}, {pipeline_mode = #tpu.pipeline_mode<synchronous>, transform_indices = @transform_3, window_bounds = array<i64: 8, 1>}, {transform_indices = @transform_4, window_bounds = array<i64: 8, 256>}, {transform_indices = @transform_5, window_bounds = array<i64: 8, 256>}]} {
    %c0 = arith.constant 0 : index
    %c0_0 = arith.constant 0 : index
    %0 = vector.load %arg5[%c0, %c0_0] : memref<8x256xf32, #tpu.memory_space<vmem>>, vector<8x256xf32>
    %c0_1 = arith.constant 0 : index
    %c0_2 = arith.constant 0 : index
    %1 = vector.load %arg1[%c0_1, %c0_2] : memref<8x1xf32, #tpu.memory_space<vmem>>, vector<8x1xf32>
    %2 = vector.broadcast %1 : vector<8x1xf32> to vector<8x256xf32>
    %3 = arith.mulf %0, %2 : vector<8x256xf32>
    %c0_3 = arith.constant 0 : index
    %c0_4 = arith.constant 0 : index
    %4 = vector.load %arg2[%c0_3, %c0_4] : memref<8x1xf32, #tpu.memory_space<vmem>>, vector<8x1xf32>
    %5 = vector.broadcast %4 : vector<8x1xf32> to vector<8x256xf32>
    %6 = arith.addf %3, %5 : vector<8x256xf32>
    %cst = arith.constant 5.000000e-01 : f32
    %7 = vector.broadcast %cst : f32 to vector<8x256xf32>
    %8 = arith.mulf %6, %7 : vector<8x256xf32>
    %9 = math.tanh %8 : vector<8x256xf32>
    %cst_5 = arith.constant 0.000000e+00 : f32
    %10 = vector.broadcast %cst_5 : f32 to vector<8x256xf32>
    %11 = arith.cmpf ogt, %6, %10 : vector<8x256xf32>
    %cst_6 = arith.constant 2.000000e+00 : f32
    %12 = vector.broadcast %cst_6 : f32 to vector<8x256xf32>
    %13 = arith.mulf %12, %9 : vector<8x256xf32>
    %cst_7 = arith.constant 1.000000e+00 : f32
    %14 = vector.broadcast %cst_7 : f32 to vector<8x256xf32>
    %15 = arith.subf %14, %9 : vector<8x256xf32>
    %16 = arith.divf %13, %15 : vector<8x256xf32>
    %17 = arith.select %11, %6, %16 : vector<8x256xi1>, vector<8x256xf32>
    %c0_8 = arith.constant 0 : index
    %c0_9 = arith.constant 0 : index
    %18 = vector.load %arg3[%c0_8, %c0_9] : memref<8x8xf32, #tpu.memory_space<vmem>>, vector<8x8xf32>
    %cst_10 = arith.constant dense<0.000000e+00> : vector<8x256xf32>
    %19 = tpu.matmul %18, %17, %cst_10 {dimension_numbers = #tpu.dot_dimension_numbers<[1], [0], [0], [1], [0, 0, 1, 1], [], []>} : vector<8x8xf32>, vector<8x256xf32>, vector<8x256xf32> -> vector<8x256xf32>
    %c0_11 = arith.constant 0 : index
    %c0_12 = arith.constant 0 : index
    %20 = vector.load %arg4[%c0_11, %c0_12] : memref<8x1xf32, #tpu.memory_space<vmem>>, vector<8x1xf32>
    %21 = vector.broadcast %20 : vector<8x1xf32> to vector<8x256xf32>
    %22 = arith.addf %19, %21 : vector<8x256xf32>
    %cst_13 = arith.constant dense<0xFF800000> : vector<256xf32>
    %23 = vector.multi_reduction <maximumf>, %22, %cst_13 [0] : vector<8x256xf32> to vector<256xf32>
    %24 = vector.shape_cast %23 : vector<256xf32> to vector<1x256xf32>
    %25 = vector.broadcast %24 : vector<1x256xf32> to vector<8x256xf32>
    %26 = arith.subf %22, %25 : vector<8x256xf32>
    %27 = math.exp %26 : vector<8x256xf32>
    %cst_14 = arith.constant dense<0.000000e+00> : vector<256xf32>
    %28 = vector.multi_reduction <add>, %27, %cst_14 [0] : vector<8x256xf32> to vector<256xf32>
    %29 = vector.shape_cast %28 : vector<256xf32> to vector<1x256xf32>
    %30 = vector.broadcast %29 : vector<1x256xf32> to vector<8x256xf32>
    %31 = arith.divf %27, %30 : vector<8x256xf32>
    %c0_15 = arith.constant 0 : index
    %c0_16 = arith.constant 0 : index
    %32 = vector.load %arg6[%c0_15, %c0_16] : memref<8x256xf32, #tpu.memory_space<vmem>>, vector<8x256xf32>
    tpu.vector_store %arg6[%c0_15, %c0_16], %31 {strides = array<i32>} : memref<8x256xf32, #tpu.memory_space<vmem>>, vector<8x256xf32>,
    return
  }
  func.func @transform_0(%arg0: i32) -> (i32, i32) {
    %c0_i32 = arith.constant 0 : i32
    %c0_i32_0 = arith.constant 0 : i32
    %c0_i32_1 = arith.constant 0 : i32
    return %c0_i32, %c0_i32_0 : i32, i32
  }
  func.func @transform_1(%arg0: i32) -> (i32, i32) {
    %c0_i32 = arith.constant 0 : i32
    %c0_i32_0 = arith.constant 0 : i32
    %c0_i32_1 = arith.constant 0 : i32
    return %c0_i32, %c0_i32_0 : i32, i32
  }
  func.func @transform_2(%arg0: i32) -> (i32, i32) {
    %c0_i32 = arith.constant 0 : i32
    %c0_i32_0 = arith.constant 0 : i32
    %c0_i32_1 = arith.constant 0 : i32
    return %c0_i32, %c0_i32_0 : i32, i32
  }
  func.func @transform_3(%arg0: i32) -> (i32, i32) {
    %c0_i32 = arith.constant 0 : i32
    %c0_i32_0 = arith.constant 0 : i32
    %c0_i32_1 = arith.constant 0 : i32
    return %c0_i32, %c0_i32_0 : i32, i32
  }
  func.func @transform_4(%arg0: i32) -> (i32, i32) {
    %c0_i32 = arith.constant 0 : i32
    %c0_i32_0 = arith.constant 0 : i32
    return %c0_i32, %arg0 : i32, i32
  }
  func.func @transform_5(%arg0: i32) -> (i32, i32) {
    %c0_i32 = arith.constant 0 : i32
    %c0_i32_0 = arith.constant 0 : i32
    return %c0_i32, %arg0 : i32, i32
  }
}

</mosaic_0001>

<llo_original>
// kernel: seghead_forward.3
$region0: #{seghead_forward.3}
  #allocation0 [shape = 'u32[]', space=smem, size = 0x4, offset = 0x4, fixed_abs, tag = 'smem constant byte address 0x4 - core index']
  #allocation1 [shape = 'u32[144,128]{1,0:T(1,128)}', space=vmem, size = 0x12000, scoped, tag = 'internal scratch']
  %s0 = inlined_call_operand.vmem [shape: f32[8,512], index: 0, kind: input, shape index: {}]
  %s1 = inlined_call_operand.vmem [shape: f32[512,1024], index: 1, kind: input, shape index: {}]
  %s2 = inlined_call_operand.vmem [shape: f32[8,1024], index: 2, kind: output, shape index: {0}]
  %s3 = inlined_call_operand.vmem [shape: f32[4,8,2], index: 3, kind: output, shape index: {1}]
  %4 = xla_tuple %s2, %s3
  %s5 = sld [smem:[#allocation0]]
  $region72: #{seghead_forward.3} parent=0
    _
  %s7 = ssub.s32 1, %s5
  %s8 = scalar_select 0, %s7, %s5
  $region1: #{seghead_forward.3} parent=0
    #allocation2 [shape = 'u8[1048576]{0}', space=vmem, size = 0x100000, scoped, tag = 'input window, operand 1']
    loop: start=0, step=1, limit=6
    $region2: #{seghead_forward.3} parent=1 // loop_pre_header
      _
    $region3: #{seghead_forward.3} parent=1 // loop_header
      %s10 = sphi 0, %s14
      %p11 = scmp.ge.s32.totalorder %s10, 6
      %s18 = sphi 0, %s18
      %s20 = sphi 0, %s18
      %s21 = sphi 0, %s20
      %s35 = sphi 0, %s21
      %s41 = sphi 0, %s43
      %s44 = sphi 0, %s41
      %s45 = sphi 0, %s44
      %s61 = sphi 0, %s45
      %s67 = sphi 0, %s69
      %s70 = sphi 0, %s67
      %s71 = sphi 0, %s70
      %s87 = sphi 0, %s71
      %s93 = sphi 0, %s95
      %s96 = sphi 0, %s93
      %s97 = sphi 0, %s96
      %s113 = sphi 0, %s97
    $region4: #{seghead_forward.3} parent=1 // loop_header_branch
      %13 = sbr.rel (%p11) target = $region8
    $region5: #{seghead_forward.3} parent=1 // loop_body
      %s15 = ssub.s32 %s10, 1
      %s16 = ssub.s32 %s10, 2
      %s17 = sadd.s32 %s10, 1
      %s19 = sadd.s32 %s18, 1
      %p22 = scmp.eq.s32.totalorder %s10, 3
      %p23 = scmp.ne.s32.totalorder %s18, %s20
      %p24 = scmp.eq.s32.totalorder %s10, 0
      %p25 = por %p23, %p24
      %p26 = scmp.ne.s32.totalorder %s18, %s20
      %p27 = scmp.eq.s32.totalorder %s15, 3
      %p28 = por %p26, %p27
      %p29 = scmp.ne.s32.totalorder %s20, %s21
      %p30 = scmp.eq.s32.totalorder %s15, 0
      %p31 = por %p29, %p30
      %p32 = scmp.ne.s32.totalorder %s20, %s21
      %p33 = scmp.eq.s32.totalorder %s16, 3
      %p34 = por %p32, %p33
      %p36 = scmp.ne.s32.totalorder %s21, %s35
      %p37 = scmp.eq.s32.totalorder %s16, 0
      %p38 = por %p36, %p37
      %s39 = ssub.s32 %s10, %s17
      %p40 = scmp.eq.s32.totalorder %s39, 0
      %s42 = sadd.s32 %s41, 1
      %s43 = scalar_select %p40, %s41, %s42
      %p46 = pneg %p40
      %p47 = scmp.eq.s32.totalorder %s10, 3
      %p48 = por %p46, %p47
      %p49 = scmp.ne.s32.totalorder %s41, %s44
      %p50 = scmp.eq.s32.totalorder %s10, 0
      %p51 = por %p49, %p50
      %p52 = scmp.ne.s32.totalorder %s41, %s44
      %p53 = scmp.eq.s32.totalorder %s15, 3
      %p54 = por %p52, %p53
      %p55 = scmp.ne.s32.totalorder %s44, %s45
      %p56 = scmp.eq.s32.totalorder %s15, 0
      %p57 = por %p55, %p56
      %p58 = scmp.ne.s32.totalorder %s44, %s45
      %p59 = scmp.eq.s32.totalorder %s16, 3
      %p60 = por %p58, %p59
      %p62 = scmp.ne.s32.totalorder %s45, %s61
      %p63 = scmp.eq.s32.totalorder %s16, 0
      %p64 = por %p62, %p63
      %s65 = ssub.s32 %s10, %s17
      %p66 = scmp.eq.s32.totalorder %s65, 0
      %s68 = sadd.s32 %s67, 1
      %s69 = scalar_select %p66, %s67, %s68
      %p72 = pneg %p66
      %p73 = scmp.eq.s32.totalorder %s10, 3
      %p74 = por %p72, %p73
      %p75 = scmp.ne.s32.totalorder %s67, %s70
      %p76 = scmp.eq.s32.totalorder %s10, 0
      %p77 = por %p75, %p76
      %p78 = scmp.ne.s32.totalorder %s67, %s70
      %p79 = scmp.eq.s32.totalorder %s15, 3
      %p80 = por %p78, %p79
      %p81 = scmp.ne.s32.totalorder %s70, %s71
      %p82 = scmp.eq.s32.totalorder %s15, 0
      %p83 = por %p81, %p82
      %p84 = scmp.ne.s32.totalorder %s70, %s71
      %p85 = scmp.eq.s32.totalorder %s16, 3
      %p86 = por %p84, %p85
      %p88 = scmp.ne.s32.totalorder %s71, %s87
      %p89 = scmp.eq.s32.totalorder %s16, 0
      %p90 = por %p88, %p89
      %s91 = ssub.s32 %s10, %s17
      %p92 = scmp.eq.s32.totalorder %s91, 0
      %s94 = sadd.s32 %s93, 1
      %s95 = scalar_select %p92, %s93, %s94
      %p98 = pneg %p92
      %p99 = scmp.eq.s32.totalorder %s10, 3
      %p100 = por %p98, %p99
      %p101 = scmp.ne.s32.totalorder %s93, %s96
      %p102 = scmp.eq.s32.totalorder %s10, 0
      %p103 = por %p101, %p102
      %p104 = scmp.ne.s32.totalorder %s93, %s96
      %p105 = scmp.eq.s32.totalorder %s15, 3
      %p106 = por %p104, %p105
      %p107 = scmp.ne.s32.totalorder %s96, %s97
      %p108 = scmp.eq.s32.totalorder %s15, 0
      %p109 = por %p107, %p108
      %p110 = scmp.ne.s32.totalorder %s96, %s97
      %p111 = scmp.eq.s32.totalorder %s16, 3
      %p112 = por %p110, %p111
      %p114 = scmp.ne.s32.totalorder %s97, %s113
      %p115 = scmp.eq.s32.totalorder %s16, 0
      %p116 = por %p114, %p115
      %p117 = scmp.le.s32.totalorder 1, %s10
      %p118 = scmp.lt.s32.totalorder %s10, 5
      %p119 = pnand %p117, %p118
      %p120 = pneg %p119
      // Predicated region
      $region9: #{seghead_forward.3} parent=5 // pred_check
        _
      $region10: #{seghead_forward.3} parent=5 // pred_check_branch
        %122 = sbr.rel (%p119) target = $region12
      $region11: #{seghead_forward.3} parent=5 // pred_region
        %s123 = ssub.s32 %s10, 1
        // Predicated region
        $region13: #{seghead_forward.3} parent=11 // pred_check
          %p124 = pneg %p31
        $region14: #{seghead_forward.3} parent=11 // pred_check_branch
          %126 = sbr.rel (%p124) target = $region16
        $region15: #{seghead_forward.3} parent=11 // pred_region
          _
        $region16: #{seghead_forward.3} parent=11 // pred_fallthru
          _
      $region12: #{seghead_forward.3} parent=5 // pred_fallthru
        _
      %p127 = scmp.lt.s32.totalorder %s10, 4
      // Predicated region
      $region17: #{seghead_forward.3} parent=5 // pred_check
        %p128 = pneg %p127
      $region18: #{seghead_forward.3} parent=5 // pred_check_branch
        %130 = sbr.rel (%p128) target = $region20
      $region19: #{seghead_forward.3} parent=5 // pred_region
        // Predicated region
        $region21: #{seghead_forward.3} parent=19 // pred_check
          %p131 = pneg %p51
        $region22: #{seghead_forward.3} parent=19 // pred_check_branch
          %133 = sbr.rel (%p131) target = $region24
        $region23: #{seghead_forward.3} parent=19 // pred_region
          %s134 = sand.u32 %s41, 1
          %s135 = sand.u32 %s41, 1
          %s136 = smul.addr %s135, 1024
          %s137 = scalar_lea.vmem [#allocation2], %s136
          %s138 = smul.u32 2, %s10
          %s139 = smul.addr %s138, 8
          %s140 = scalar_lea.vmem %s1, %s139
          // Predicated region
          $region25: #{seghead_forward.3} parent=23 // pred_check
            _
          $region26: #{seghead_forward.3} parent=23 // pred_check_branch
            %142 = sbr.rel (0) target = $region28
          $region27: #{seghead_forward.3} parent=23 // pred_region
            // Predicated region
            $region29: #{seghead_forward.3} parent=27 // pred_check
              _
            $region30: #{seghead_forward.3} parent=27 // pred_check_branch
              %144 = sbr.rel (0) target = $region32
            $region31: #{seghead_forward.3} parent=27 // pred_region
              loop: start=0, step=1, limit=1
              $region33: #{seghead_forward.3} parent=31 // loop_pre_header
                _
              $region34: #{seghead_forward.3} parent=31 // loop_header
                %s146 = sphi 0, %s150
                %p147 = scmp.ge.s32.totalorder %s146, 1
                %s151 = sphi %s140, %s140
                %s152 = sphi %s137, %s137
              $region35: #{seghead_forward.3} parent=31 // loop_header_branch
                %149 = sbr.rel (%p147) target = $region39
              $region36: #{seghead_forward.3} parent=31 // loop_body
                %v153 = vld [vmem:[%s151] sm:$0xff]
                %154 = vst [vmem:[%s152] sm:$0xff] %v153
                %v155 = vld [vmem:[%s151 + $0x8] sm:$0xff]
                %156 = vst [vmem:[%s152 + $0x8] sm:$0xff] %v155
                %v157 = vld [vmem:[%s151 + $0x40] sm:$0xff]
                %158 = vst [vmem:[%s152 + $0x10] sm:$0xff] %v157
                %v159 = vld [vmem:[%s151 + $0x48] sm:$0xff]
                %160 = vst [vmem:[%s152 + $0x18] sm:$0xff] %v159
                %v161 = vld [vmem:[%s151 + $0x80] sm:$0xff]
                %162 = vst [vmem:[%s152 + $0x20] sm:$0xff] %v161
                %v163 = vld [vmem:[%s151 + $0x88] sm:$0xff]
                %164 = vst [vmem:[%s152 + $0x28] sm:$0xff] %v163
                %v165 = vld [vmem:[%s151 + $0xc0] sm:$0xff]
                %166 = vst [vmem:[%s152 + $0x30] sm:$0xff] %v165
                %v167 = vld [vmem:[%s151 + $0xc8] sm:$0xff]
                %168 = vst [vmem:[%s152 + $0x38] sm:$0xff] %v167
                %v169 = vld [vmem:[%s151 + $0x100] sm:$0xff]
                %170 = vst [vmem:[%s152 + $0x40] sm:$0xff] %v169
                %v171 = vld [vmem:[%s151 + $0x108] sm:$0xff]
                %172 = vst [vmem:[%s152 + $0x48] sm:$0xff] %v171
                %v173 = vld [vmem:[%s151 + $0x140] sm:$0xff]
                %174 = vst [vmem:[%s152 + $0x50] sm:$0xff] %v173
                %v175 = vld [vmem:[%s151 + $0x148] sm:$0xff]
                %176 = vst [vmem:[%s152 + $0x58] sm:$0xff] %v175
                %v177 = vld [vmem:[%s151 + $0x180] sm:$0xff]
                %178 = vst [vmem:[%s152 + $0x60] sm:$0xff] %v177
                %v179 = vld [vmem:[%s151 + $0x188] sm:$0xff]
                %180 = vst [vmem:[%s152 + $0x68] sm:$0xff] %v179
                %v181 = vld [vmem:[%s151 + $0x1c0] sm:$0xff]
                %182 = vst [vmem:[%s152 + $0x70] sm:$0xff] %v181
                %v183 = vld [vmem:[%s151 + $0x1c8] sm:$0xff]
                %184 = vst [vmem:[%s152 + $0x78] sm:$0xff] %v183
                %v185 = vld [vmem:[%s151 + $0x200] sm:$0xff]
                %186 = vst [vmem:[%s152 + $0x80] sm:$0xff] %v185
                %v187 = vld [vmem:[%s151 + $0x208] sm:$0xff]
                %188 = vst [vmem:[%s152 + $0x88] sm:$0xff] %v187
                %v189 = vld [vmem:[%s151 + $0x240] sm:$0xff]
                %190 = vst [vmem:[%s152 + $0x90] sm:$0xff] %v189
                %v191 = vld [vmem:[%s151 + $0x248] sm:$0xff]
                %192 = vst [vmem:[%s152 + $0x98] sm:$0xff] %v191
                %v193 = vld [vmem:[%s151 + $0x280] sm:$0xff]
                %194 = vst [vmem:[%s152 + $0xa0] sm:$0xff] %v193
                %v195 = vld [vmem:[%s151 + $0x288] sm:$0xff]
                %196 = vst [vmem:[%s152 + $0xa8] sm:$0xff] %v195
                %v197 = vld [vmem:[%s151 + $0x2c0] sm:$0xff]
                %198 = vst [vmem:[%s152 + $0xb0] sm:$0xff] %v197
                %v199 = vld [vmem:[%s151 + $0x2c8] sm:$0xff]
                %200 = vst [vmem:[%s152 + $0xb8] sm:$0xff] %v199
                %v201 = vld [vmem:[%s151 + $0x300] sm:$0xff]
                %202 = vst [vmem:[%s152 + $0xc0] sm:$0xff] %v201
                %v203 = vld [vmem:[%s151 + $0x308] sm:$0xff]
                %204 = vst [vmem:[%s152 + $0xc8] sm:$0xff] %v203
                %v205 = vld [vmem:[%s151 + $0x340] sm:$0xff]
                %206 = vst [vmem:[%s152 + $0xd0] sm:$0xff] %v205
                %v207 = vld [vmem:[%s151 + $0x348] sm:$0xff]
                %208 = vst [vmem:[%s152 + $0xd8] sm:$0xff] %v207
                %v209 = vld [vmem:[%s151 + $0x380] sm:$0xff]
                %210 = vst [vmem:[%s152 + $0xe0] sm:$0xff] %v209
                %v211 = vld [vmem:[%s151 + $0x388] sm:$0xff]
                %212 = vst [vmem:[%s152 + $0xe8] sm:$0xff] %v211
                %v213 = vld [vmem:[%s151 + $0x3c0] sm:$0xff]
                %214 = vst [vmem:[%s152 + $0xf0] sm:$0xff] %v213
                %v215 = vld [vmem:[%s151 + $0x3c8] sm:$0xff]
                %216 = vst [vmem:[%s152 + $0xf8] sm:$0xff] %v215
                %v217 = vld [vmem:[%s151 + $0x400] sm:$0xff]
                %218 = vst [vmem:[%s152 + $0x100] sm:$0xff] %v217
                %v219 = vld [vmem:[%s151 + $0x408] sm:$0xff]
                %220 = vst [vmem:[%s152 + $0x108] sm:$0xff] %v219
                %v221 = vld [vmem:[%s151 + $0x440] sm:$0xff]
                %222 = vst [vmem:[%s152 + $0x110] sm:$0xff] %v221
                %v223 = vld [vmem:[%s151 + $0x448] sm:$0xff]
                %224 = vst [vmem:[%s152 + $0x118] sm:$0xff] %v223
                %v225 = vld [vmem:[%s151 + $0x480] sm:$0xff]
                %226 = vst [vmem:[%s152 + $0x120] sm:$0xff] %v225
                %v227 = vld [vmem:[%s151 + $0x488] sm:$0xff]
                %228 = vst [vmem:[%s152 + $0x128] sm:$0xff] %v227
                %v229 = vld [vmem:[%s151 + $0x4c0] sm:$0xff]
                %230 = vst [vmem:[%s152 + $0x130] sm:$0xff] %v229
                %v231 = vld [vmem:[%s151 + $0x4c8] sm:$0xff]
                %232 = vst [vmem:[%s152 + $0x138] sm:$0xff] %v231
                %v233 = vld [vmem:[%s151 + $0x500] sm:$0xff]
                %234 = vst [vmem:[%s152 + $0x140] sm:$0xff] %v233
                %v235 = vld [vmem:[%s151 + $0x508] sm:$0xff]
                %236 = vst [vmem:[%s152 + $0x148] sm:$0xff] %v235
                %v237 = vld [vmem:[%s151 + $0x540] sm:$0xff]
                %238 = vst [vmem:[%s152 + $0x150] sm:$0xff] %v237
                %v239 = vld [vmem:[%s151 + $0x548] sm:$0xff]
                %240 = vst [vmem:[%s152 + $0x158] sm:$0xff] %v239
                %v241 = vld [vmem:[%s151 + $0x580] sm:$0xff]
                %242 = vst [vmem:[%s152 + $0x160] sm:$0xff] %v241
                %v243 = vld [vmem:[%s151 + $0x588] sm:$0xff]
                %244 = vst [vmem:[%s152 + $0x168] sm:$0xff] %v243
                %v245 = vld [vmem:[%s151 + $0x5c0] sm:$0xff]
                %246 = vst [vmem:[%s152 + $0x170] sm:$0xff] %v245
                %v247 = vld [vmem:[%s151 + $0x5c8] sm:$0xff]
                %248 = vst [vmem:[%s152 + $0x178] sm:$0xff] %v247
                %v249 = vld [vmem:[%s151 + $0x600] sm:$0xff]
                %250 = vst [vmem:[%s152 + $0x180] sm:$0xff] %v249
                %v251 = vld [vmem:[%s151 + $0x608] sm:$0xff]
                %252 = vst [vmem:[%s152 + $0x188] sm:$0xff] %v251
                %v253 = vld [vmem:[%s151 + $0x640] sm:$0xff]
                %254 = vst [vmem:[%s152 + $0x190] sm:$0xff] %v253
                %v255 = vld [vmem:[%s151 + $0x648] sm:$0xff]
                %256 = vst [vmem:[%s152 + $0x198] sm:$0xff] %v255
                %v257 = vld [vmem:[%s151 + $0x680] sm:$0xff]
                %258 = vst [vmem:[%s152 + $0x1a0] sm:$0xff] %v257
                %v259 = vld [vmem:[%s151 + $0x688] sm:$0xff]
                %260 = vst [vmem:[%s152 + $0x1a8] sm:$0xff] %v259
                %v261 = vld [vmem:[%s151 + $0x6c0] sm:$0xff]
                %262 = vst [vmem:[%s152 + $0x1b0] sm:$0xff] %v261
                %v263 = vld [vmem:[%s151 + $0x6c8] sm:$0xff]
                %264 = vst [vmem:[%s152 + $0x1b8] sm:$0xff] %v263
                %v265 = vld [vmem:[%s151 + $0x700] sm:$0xff]
                %266 = vst [vmem:[%s152 + $0x1c0] sm:$0xff] %v265
                %v267 = vld [vmem:[%s151 + $0x708] sm:$0xff]
                %268 = vst [vmem:[%s152 + $0x1c8] sm:$0xff] %v267
                %v269 = vld [vmem:[%s151 + $0x740] sm:$0xff]
                %270 = vst [vmem:[%s152 + $0x1d0] sm:$0xff] %v269
                %v271 = vld [vmem:[%s151 + $0x748] sm:$0xff]
                %272 = vst [vmem:[%s152 + $0x1d8] sm:$0xff] %v271
                %v273 = vld [vmem:[%s151 + $0x780] sm:$0xff]
                %274 = vst [vmem:[%s152 + $0x1e0] sm:$0xff] %v273
                %v275 = vld [vmem:[%s151 + $0x788] sm:$0xff]
                %276 = vst [vmem:[%s152 + $0x1e8] sm:$0xff] %v275
                %v277 = vld [vmem:[%s151 + $0x7c0] sm:$0xff]
                %278 = vst [vmem:[%s152 + $0x1f0] sm:$0xff] %v277
                %v279 = vld [vmem:[%s151 + $0x7c8] sm:$0xff]
                %280 = vst [vmem:[%s152 + $0x1f8] sm:$0xff] %v279
                %v281 = vld [vmem:[%s151 + $0x800] sm:$0xff]
                %282 = vst [vmem:[%s152 + $0x200] sm:$0xff] %v281
                %v283 = vld [vmem:[%s151 + $0x808] sm:$0xff]
                %284 = vst [vmem:[%s152 + $0x208] sm:$0xff] %v283
                %v285 = vld [vmem:[%s151 + $0x840] sm:$0xff]
                %286 = vst [vmem:[%s152 + $0x210] sm:$0xff] %v285
                %v287 = vld [vmem:[%s151 + $0x848] sm:$0xff]
                %288 = vst [vmem:[%s152 + $0x218] sm:$0xff] %v287
                %v289 = vld [vmem:[%s151 + $0x880] sm:$0xff]
                %290 = vst [vmem:[%s152 + $0x220] sm:$0xff] %v289
                %v291 = vld [vmem:[%s151 + $0x888] sm:$0xff]
                %292 = vst [vmem:[%s152 + $0x228] sm:$0xff] %v291
                %v293 = vld [vmem:[%s151 + $0x8c0] sm:$0xff]
                %294 = vst [vmem:[%s152 + $0x230] sm:$0xff] %v293
                %v295 = vld [vmem:[%s151 + $0x8c8] sm:$0xff]
                %296 = vst [vmem:[%s152 + $0x238] sm:$0xff] %v295
                %v297 = vld [vmem:[%s151 + $0x900] sm:$0xff]
                %298 = vst [vmem:[%s152 + $0x240] sm:$0xff] %v297
                %v299 = vld [vmem:[%s151 + $0x908] sm:$0xff]
                %300 = vst [vmem:[%s152 + $0x248] sm:$0xff] %v299
                %v301 = vld [vmem:[%s151 + $0x940] sm:$0xff]
                %302 = vst [vmem:[%s152 + $0x250] sm:$0xff] %v301
                %v303 = vld [vmem:[%s151 + $0x948] sm:$0xff]
                %304 = vst [vmem:[%s152 + $0x258] sm:$0xff] %v303
                %v305 = vld [vmem:[%s151 + $0x980] sm:$0xff]
                %306 = vst [vmem:[%s152 + $0x260] sm:$0xff] %v305
                %v307 = vld [vmem:[%s151 + $0x988] sm:$0xff]
                %308 = vst [vmem:[%s152 + $0x268] sm:$0xff] %v307
                %v309 = vld [vmem:[%s151 + $0x9c0] sm:$0xff]
                %310 = vst [vmem:[%s152 + $0x270] sm:$0xff] %v309
                %v311 = vld [vmem:[%s151 + $0x9c8] sm:$0xff]
                %312 = vst [vmem:[%s152 + $0x278] sm:$0xff] %v311
                %v313 = vld [vmem:[%s151 + $0xa00] sm:$0xff]
                %314 = vst [vmem:[%s152 + $0x280] sm:$0xff] %v313
                %v315 = vld [vmem:[%s151 + $0xa08] sm:$0xff]
                %316 = vst [vmem:[%s152 + $0x288] sm:$0xff] %v315
                %v317 = vld [vmem:[%s151 + $0xa40] sm:$0xff]
                %318 = vst [vmem:[%s152 + $0x290] sm:$0xff] %v317
                %v319 = vld [vmem:[%s151 + $0xa48] sm:$0xff]
                %320 = vst [vmem:[%s152 + $0x298] sm:$0xff] %v319
                %v321 = vld [vmem:[%s151 + $0xa80] sm:$0xff]
                %322 = vst [vmem:[%s152 + $0x2a0] sm:$0xff] %v321
                %v323 = vld [vmem:[%s151 + $0xa88] sm:$0xff]
                %324 = vst [vmem:[%s152 + $0x2a8] sm:$0xff] %v323
                %v325 = vld [vmem:[%s151 + $0xac0] sm:$0xff]
                %326 = vst [vmem:[%s152 + $0x2b0] sm:$0xff] %v325
                %v327 = vld [vmem:[%s151 + $0xac8] sm:$0xff]
                %328 = vst [vmem:[%s152 + $0x2b8] sm:$0xff] %v327
                %v329 = vld [vmem:[%s151 + $0xb00] sm:$0xff]
                %330 = vst [vmem:[%s152 + $0x2c0] sm:$0xff] %v329
                %v331 = vld [vmem:[%s151 + $0xb08] sm:$0xff]
                %332 = vst [vmem:[%s152 + $0x2c8] sm:$0xff] %v331
                %v333 = vld [vmem:[%s151 + $0xb40] sm:$0xff]
                %334 = vst [vmem:[%s152 + $0x2d0] sm:$0xff] %v333
                %v335 = vld [vmem:[%s151 + $0xb48] sm:$0xff]
                %336 = vst [vmem:[%s152 + $0x2d8] sm:$0xff] %v335
                %v337 = vld [vmem:[%s151 + $0xb80] sm:$0xff]
                %338 = vst [vmem:[%s152 + $0x2e0] sm:$0xff] %v337
                %v339 = vld [vmem:[%s151 + $0xb88] sm:$0xff]
                %340 = vst [vmem:[%s152 + $0x2e8] sm:$0xff] %v339
                %v341 = vld [vmem:[%s151 + $0xbc0] sm:$0xff]
                %342 = vst [vmem:[%s152 + $0x2f0] sm:$0xff] %v341
                %v343 = vld [vmem:[%s151 + $0xbc8] sm:$0xff]
                %344 = vst [vmem:[%s152 + $0x2f8] sm:$0xff] %v343
                %v345 = vld [vmem:[%s151 + $0xc00] sm:$0xff]
                %346 = vst [vmem:[%s152 + $0x300] sm:$0xff] %v345
                %v347 = vld [vmem:[%s151 + $0xc08] sm:$0xff]
                %348 = vst [vmem:[%s152 + $0x308] sm:$0xff] %v347
                %v349 = vld [vmem:[%s151 + $0xc40] sm:$0xff]
                %350 = vst [vmem:[%s152 + $0x310] sm:$0xff] %v349
                %v351 = vld [vmem:[%s151 + $0xc48] sm:$0xff]
                %352 = vst [vmem:[%s152 + $0x318] sm:$0xff] %v351
                %v353 = vld [vmem:[%s151 + $0xc80] sm:$0xff]
                %354 = vst [vmem:[%s152 + $0x320] sm:$0xff] %v353
                %v355 = vld [vmem:[%s151 + $0xc88] sm:$0xff]
                %356 = vst [vmem:[%s152 + $0x328] sm:$0xff] %v355
                %v357 = vld [vmem:[%s151 + $0xcc0] sm:$0xff]
                %358 = vst [vmem:[%s152 + $0x330] sm:$0xff] %v357
                %v359 = vld [vmem:[%s151 + $0xcc8] sm:$0xff]
                %360 = vst [vmem:[%s152 + $0x338] sm:$0xff] %v359
                %v361 = vld [vmem:[%s151 + $0xd00] sm:$0xff]
                %362 = vst [vmem:[%s152 + $0x340] sm:$0xff] %v361
                %v363 = vld [vmem:[%s151 + $0xd08] sm:$0xff]
                %364 = vst [vmem:[%s152 + $0x348] sm:$0xff] %v363
                %v365 = vld [vmem:[%s151 + $0xd40] sm:$0xff]
                %366 = vst [vmem:[%s152 + $0x350] sm:$0xff] %v365
                %v367 = vld [vmem:[%s151 + $0xd48] sm:$0xff]
                %368 = vst [vmem:[%s152 + $0x358] sm:$0xff] %v367
                %v369 = vld [vmem:[%s151 + $0xd80] sm:$0xff]
                %370 = vst [vmem:[%s152 + $0x360] sm:$0xff] %v369
                %v371 = vld [vmem:[%s151 + $0xd88] sm:$0xff]
                %372 = vst [vmem:[%s152 + $0x368] sm:$0xff] %v371
                %v373 = vld [vmem:[%s151 + $0xdc0] sm:$0xff]
                %374 = vst [vmem:[%s152 + $0x370] sm:$0xff] %v373
                %v375 = vld [vmem:[%s151 + $0xdc8] sm:$0xff]
                %376 = vst [vmem:[%s152 + $0x378] sm:$0xff] %v375
                %v377 = vld [vmem:[%s151 + $0xe00] sm:$0xff]
                %378 = vst [vmem:[%s152 + $0x380] sm:$0xff] %v377
                %v379 = vld [vmem:[%s151 + $0xe08] sm:$0xff]
                %380 = vst [vmem:[%s152 + $0x388] sm:$0xff] %v379
                %v381 = vld [vmem:[%s151 + $0xe40] sm:$0xff]
                %382 = vst [vmem:[%s152 + $0x390] sm:$0xff] %v381
                %v383 = vld [vmem:[%s151 + $0xe48] sm:$0xff]
                %384 = vst [vmem:[%s152 + $0x398] sm:$0xff] %v383
                %v385 = vld [vmem:[%s151 + $0xe80] sm:$0xff]
                %386 = vst [vmem:[%s152 + $0x3a0] sm:$0xff] %v385
                %v387 = vld [vmem:[%s151 + $0xe88] sm:$0xff]
                %388 = vst [vmem:[%s152 + $0x3a8] sm:$0xff] %v387
                %v389 = vld [vmem:[%s151 + $0xec0] sm:$0xff]
                %390 = vst [vmem:[%s152 + $0x3b0] sm:$0xff] %v389
                %v391 = vld [vmem:[%s151 + $0xec8] sm:$0xff]
                %392 = vst [vmem:[%s152 + $0x3b8] sm:$0xff] %v391
                %v393 = vld [vmem:[%s151 + $0xf00] sm:$0xff]
                %394 = vst [vmem:[%s152 + $0x3c0] sm:$0xff] %v393
                %v395 = vld [vmem:[%s151 + $0xf08] sm:$0xff]
                %396 = vst [vmem:[%s152 + $0x3c8] sm:$0xff] %v395
                %v397 = vld [vmem:[%s151 + $0xf40] sm:$0xff]
                %398 = vst [vmem:[%s152 + $0x3d0] sm:$0xff] %v397
                %v399 = vld [vmem:[%s151 + $0xf48] sm:$0xff]
                %400 = vst [vmem:[%s152 + $0x3d8] sm:$0xff] %v399
                %v401 = vld [vmem:[%s151 + $0xf80] sm:$0xff]
                %402 = vst [vmem:[%s152 + $0x3e0] sm:$0xff] %v401
                %v403 = vld [vmem:[%s151 + $0xf88] sm:$0xff]
                %404 = vst [vmem:[%s152 + $0x3e8] sm:$0xff] %v403
                %v405 = vld [vmem:[%s151 + $0xfc0] sm:$0xff]
                %406 = vst [vmem:[%s152 + $0x3f0] sm:$0xff] %v405
                %v407 = vld [vmem:[%s151 + $0xfc8] sm:$0xff]
                %408 = vst [vmem:[%s152 + $0x3f8] sm:$0xff] %v407
              $region37: #{seghead_forward.3} parent=31 // loop_footer
                %s150 = sadd.s32 1, %s146
              $region38: #{seghead_forward.3} parent=31 // loop_footer_branch
                %145 = sbr.rel target = $region34
              $region39: #{seghead_forward.3} parent=31 // loop_exit
                _
            $region32: #{seghead_forward.3} parent=27 // pred_fallthru
              _
            // Predicated region
            $region40: #{seghead_forward.3} parent=27 // pred_check
              _
            $region41: #{seghead_forward.3} parent=27 // pred_check_branch
              %410 = sbr.rel target = $region43
            $region42: #{seghead_forward.3} parent=27 // pred_region
              _
            $region43: #{seghead_forward.3} parent=27 // pred_fallthru
              _
          $region28: #{seghead_forward.3} parent=23 // pred_fallthru
            _
          %411 = vnop
        $region24: #{seghead_forward.3} parent=19 // pred_fallthru
          _
      $region20: #{seghead_forward.3} parent=5 // pred_fallthru
        _
      %p412 = scmp.le.s32.totalorder 1, %s10
      %p413 = scmp.lt.s32.totalorder %s10, 5
      %p414 = pnand %p412, %p413
      %p415 = pneg %p414
      // Predicated region
      $region44: #{seghead_forward.3} parent=5 // pred_check
        _
      $region45: #{seghead_forward.3} parent=5 // pred_check_branch
        %417 = sbr.rel (%p414) target = $region47
      $region46: #{seghead_forward.3} parent=5 // pred_region
        %s418 = ssub.s32 %s10, 1
        %s419 = sand.u32 %s44, 1
        %s420 = sand.u32 %s44, 1
        %s421 = smul.addr %s420, 1024
        %s422 = scalar_lea.vmem [#allocation2], %s421
        // Predicated region
        $region48: #{seghead_forward.3} parent=46 // pred_check
          %p423 = pneg %p57
        $region49: #{seghead_forward.3} parent=46 // pred_check_branch
          %425 = sbr.rel (%p423) target = $region51
        $region50: #{seghead_forward.3} parent=46 // pred_region
          _
        $region51: #{seghead_forward.3} parent=46 // pred_fallthru
          _
        %p426 = pneg %p31
        %p427 = pneg %p28
        %s428 = sand.u32 %s44, 1
        %s429 = sand.u32 %s44, 1
        %s430 = smul.addr %s429, 1024
        %s431 = scalar_lea.vmem [#allocation2], %s430
        %p432 = pneg %p57
        %p433 = pneg %p54
        %p434 = pneg %p83
        %p435 = pneg %p80
        %s436 = smul.u32 2, %s15
        %p437 = scmp.lt.s32.totalorder %s436, 7
        %s438 = scalar_select %p437, %s436, 7
        %s439 = smul.addr %s438, 8
        %s440 = scalar_lea.vmem %s2, %s439
        %p441 = pneg %p109
        %p442 = pneg %p106
        %p443 = scmp.lt.s32.totalorder %s15, 3
        %s444 = scalar_select %p443, %s15, 3
        %s445 = smul.addr %s444, 8
        %s446 = scalar_lea.vmem %s3, %s445
        %s447 = smul.u32 2, %s15
        %s448 = smul.u32 2, %s15
        %p449 = scmp.lt.s32.totalorder %s448, 7
        %s450 = scalar_select %p449, %s448, 7
        %s451 = smul.addr %s450, 8
        %s452 = scalar_lea.vmem %s2, %s451
        %s453 = smul.u32 2, %s15
        %p454 = scmp.lt.s32.totalorder %s15, 3
        %s455 = scalar_select %p454, %s15, 3
        %s456 = smul.addr %s455, 8
        %s457 = scalar_lea.vmem %s3, %s456
        %v458 = vld [vmem:[%s0] sm:$0xff]
        %v459 = vld [vmem:[%s0 + $0x8] sm:$0xff]
        %v460 = vld [vmem:[%s0 + $0x10] sm:$0xff]
        %v461 = vld [vmem:[%s0 + $0x18] sm:$0xff]
        %v462 = vld [vmem:[%s422] sm:$0xff]
        %v463 = vld [vmem:[%s422 + $0x8] sm:$0xff]
        %v464 = vld [vmem:[%s422 + $0x10] sm:$0xff]
        %v465 = vld [vmem:[%s422 + $0x18] sm:$0xff]
        %v466 = vld [vmem:[%s422 + $0x20] sm:$0xff]
        %v467 = vld [vmem:[%s422 + $0x28] sm:$0xff]
        %v468 = vld [vmem:[%s422 + $0x30] sm:$0xff]
        %v469 = vld [vmem:[%s422 + $0x38] sm:$0xff]
        %v470 = vld [vmem:[%s422 + $0x40] sm:$0xff]
        %v471 = vld [vmem:[%s422 + $0x48] sm:$0xff]
        %v472 = vld [vmem:[%s422 + $0x50] sm:$0xff]
        %v473 = vld [vmem:[%s422 + $0x58] sm:$0xff]
        %v474 = vld [vmem:[%s422 + $0x60] sm:$0xff]
        %v475 = vld [vmem:[%s422 + $0x68] sm:$0xff]
        %v476 = vld [vmem:[%s422 + $0x70] sm:$0xff]
        %v477 = vld [vmem:[%s422 + $0x78] sm:$0xff]
        %v478 = vld [vmem:[%s422 + $0x80] sm:$0xff]
        %v479 = vld [vmem:[%s422 + $0x88] sm:$0xff]
        %v480 = vld [vmem:[%s422 + $0x90] sm:$0xff]
        %v481 = vld [vmem:[%s422 + $0x98] sm:$0xff]
        %v482 = vld [vmem:[%s422 + $0xa0] sm:$0xff]
        %v483 = vld [vmem:[%s422 + $0xa8] sm:$0xff]
        %v484 = vld [vmem:[%s422 + $0xb0] sm:$0xff]
        %v485 = vld [vmem:[%s422 + $0xb8] sm:$0xff]
        %v486 = vld [vmem:[%s422 + $0xc0] sm:$0xff]
        %v487 = vld [vmem:[%s422 + $0xc8] sm:$0xff]
        %v488 = vld [vmem:[%s422 + $0xd0] sm:$0xff]
        %v489 = vld [vmem:[%s422 + $0xd8] sm:$0xff]
        %v490 = vld [vmem:[%s422 + $0xe0] sm:$0xff]
        %v491 = vld [vmem:[%s422 + $0xe8] sm:$0xff]
        %v492 = vld [vmem:[%s422 + $0xf0] sm:$0xff]
        %v493 = vld [vmem:[%s422 + $0xf8] sm:$0xff]
        %v494 = vld [vmem:[%s422 + $0x100] sm:$0xff]
        %v495 = vld [vmem:[%s422 + $0x108] sm:$0xff]
        %v496 = vld [vmem:[%s422 + $0x110] sm:$0xff]
        %v497 = vld [vmem:[%s422 + $0x118] sm:$0xff]
        %v498 = vld [vmem:[%s422 + $0x120] sm:$0xff]
        %v499 = vld [vmem:[%s422 + $0x128] sm:$0xff]
        %v500 = vld [vmem:[%s422 + $0x130] sm:$0xff]
        %v501 = vld [vmem:[%s422 + $0x138] sm:$0xff]
        %v502 = vld [vmem:[%s422 + $0x140] sm:$0xff]
        %v503 = vld [vmem:[%s422 + $0x148] sm:$0xff]
        %v504 = vld [vmem:[%s422 + $0x150] sm:$0xff]
        %v505 = vld [vmem:[%s422 + $0x158] sm:$0xff]
        %v506 = vld [vmem:[%s422 + $0x160] sm:$0xff]
        %v507 = vld [vmem:[%s422 + $0x168] sm:$0xff]
        %v508 = vld [vmem:[%s422 + $0x170] sm:$0xff]
        %v509 = vld [vmem:[%s422 + $0x178] sm:$0xff]
        %v510 = vld [vmem:[%s422 + $0x180] sm:$0xff]
        %v511 = vld [vmem:[%s422 + $0x188] sm:$0xff]
        %v512 = vld [vmem:[%s422 + $0x190] sm:$0xff]
        %v513 = vld [vmem:[%s422 + $0x198] sm:$0xff]
        %v514 = vld [vmem:[%s422 + $0x1a0] sm:$0xff]
        %v515 = vld [vmem:[%s422 + $0x1a8] sm:$0xff]
        %v516 = vld [vmem:[%s422 + $0x1b0] sm:$0xff]
        %v517 = vld [vmem:[%s422 + $0x1b8] sm:$0xff]
        %v518 = vld [vmem:[%s422 + $0x1c0] sm:$0xff]
        %v519 = vld [vmem:[%s422 + $0x1c8] sm:$0xff]
        %v520 = vld [vmem:[%s422 + $0x1d0] sm:$0xff]
        %v521 = vld [vmem:[%s422 + $0x1d8] sm:$0xff]
        %v522 = vld [vmem:[%s422 + $0x1e0] sm:$0xff]
        %v523 = vld [vmem:[%s422 + $0x1e8] sm:$0xff]
        %v524 = vld [vmem:[%s422 + $0x1f0] sm:$0xff]
        %v525 = vld [vmem:[%s422 + $0x1f8] sm:$0xff]
        %v526 = vld [vmem:[%s422 + $0x200] sm:$0xff]
        %v527 = vld [vmem:[%s422 + $0x208] sm:$0xff]
        %v528 = vld [vmem:[%s422 + $0x210] sm:$0xff]
        %v529 = vld [vmem:[%s422 + $0x218] sm:$0xff]
        %v530 = vld [vmem:[%s422 + $0x220] sm:$0xff]
        %v531 = vld [vmem:[%s422 + $0x228] sm:$0xff]
        %v532 = vld [vmem:[%s422 + $0x230] sm:$0xff]
        %v533 = vld [vmem:[%s422 + $0x238] sm:$0xff]
        %v534 = vld [vmem:[%s422 + $0x240] sm:$0xff]
        %v535 = vld [vmem:[%s422 + $0x248] sm:$0xff]
        %v536 = vld [vmem:[%s422 + $0x250] sm:$0xff]
        %v537 = vld [vmem:[%s422 + $0x258] sm:$0xff]
        %v538 = vld [vmem:[%s422 + $0x260] sm:$0xff]
        %v539 = vld [vmem:[%s422 + $0x268] sm:$0xff]
        %v540 = vld [vmem:[%s422 + $0x270] sm:$0xff]
        %v541 = vld [vmem:[%s422 + $0x278] sm:$0xff]
        %v542 = vld [vmem:[%s422 + $0x280] sm:$0xff]
        %v543 = vld [vmem:[%s422 + $0x288] sm:$0xff]
        %v544 = vld [vmem:[%s422 + $0x290] sm:$0xff]
        %v545 = vld [vmem:[%s422 + $0x298] sm:$0xff]
        %v546 = vld [vmem:[%s422 + $0x2a0] sm:$0xff]
        %v547 = vld [vmem:[%s422 + $0x2a8] sm:$0xff]
        %v548 = vld [vmem:[%s422 + $0x2b0] sm:$0xff]
        %v549 = vld [vmem:[%s422 + $0x2b8] sm:$0xff]
        %v550 = vld [vmem:[%s422 + $0x2c0] sm:$0xff]
        %v551 = vld [vmem:[%s422 + $0x2c8] sm:$0xff]
        %v552 = vld [vmem:[%s422 + $0x2d0] sm:$0xff]
        %v553 = vld [vmem:[%s422 + $0x2d8] sm:$0xff]
        %v554 = vld [vmem:[%s422 + $0x2e0] sm:$0xff]
        %v555 = vld [vmem:[%s422 + $0x2e8] sm:$0xff]
        %v556 = vld [vmem:[%s422 + $0x2f0] sm:$0xff]
        %v557 = vld [vmem:[%s422 + $0x2f8] sm:$0xff]
        %v558 = vld [vmem:[%s422 + $0x300] sm:$0xff]
        %v559 = vld [vmem:[%s422 + $0x308] sm:$0xff]
        %v560 = vld [vmem:[%s422 + $0x310] sm:$0xff]
        %v561 = vld [vmem:[%s422 + $0x318] sm:$0xff]
        %v562 = vld [vmem:[%s422 + $0x320] sm:$0xff]
        %v563 = vld [vmem:[%s422 + $0x328] sm:$0xff]
        %v564 = vld [vmem:[%s422 + $0x330] sm:$0xff]
        %v565 = vld [vmem:[%s422 + $0x338] sm:$0xff]
        %v566 = vld [vmem:[%s422 + $0x340] sm:$0xff]
        %v567 = vld [vmem:[%s422 + $0x348] sm:$0xff]
        %v568 = vld [vmem:[%s422 + $0x350] sm:$0xff]
        %v569 = vld [vmem:[%s422 + $0x358] sm:$0xff]
        %v570 = vld [vmem:[%s422 + $0x360] sm:$0xff]
        %v571 = vld [vmem:[%s422 + $0x368] sm:$0xff]
        %v572 = vld [vmem:[%s422 + $0x370] sm:$0xff]
        %v573 = vld [vmem:[%s422 + $0x378] sm:$0xff]
        %v574 = vld [vmem:[%s422 + $0x380] sm:$0xff]
        %v575 = vld [vmem:[%s422 + $0x388] sm:$0xff]
        %v576 = vld [vmem:[%s422 + $0x390] sm:$0xff]
        %v577 = vld [vmem:[%s422 + $0x398] sm:$0xff]
        %v578 = vld [vmem:[%s422 + $0x3a0] sm:$0xff]
        %v579 = vld [vmem:[%s422 + $0x3a8] sm:$0xff]
        %v580 = vld [vmem:[%s422 + $0x3b0] sm:$0xff]
        %v581 = vld [vmem:[%s422 + $0x3b8] sm:$0xff]
        %v582 = vld [vmem:[%s422 + $0x3c0] sm:$0xff]
        %v583 = vld [vmem:[%s422 + $0x3c8] sm:$0xff]
        %v584 = vld [vmem:[%s422 + $0x3d0] sm:$0xff]
        %v585 = vld [vmem:[%s422 + $0x3d8] sm:$0xff]
        %v586 = vld [vmem:[%s422 + $0x3e0] sm:$0xff]
        %v587 = vld [vmem:[%s422 + $0x3e8] sm:$0xff]
        %v588 = vld [vmem:[%s422 + $0x3f0] sm:$0xff]
        %v589 = vld [vmem:[%s422 + $0x3f8] sm:$0xff]
        %590 = vmatprep.subr.mxu0 %v463
        %591 = vmatpush1.msra.mxu0 %v462
        %592 = vmatprep.subr.mxu0 %v465
        %593 = vmatpush1.msra.mxu0 %v464
        %594 = vmatprep.subr.mxu0 %v467
        %595 = vmatpush1.msra.mxu0 %v466
        %596 = vmatprep.subr.mxu0 %v469
        %597 = vmatpush1.msra.mxu0 %v468
        %598 = vmatprep.subr.mxu0 %v471
        %599 = vmatpush1.msra.mxu0 %v470
        %600 = vmatprep.subr.mxu0 %v473
        %601 = vmatpush1.msra.mxu0 %v472
        %602 = vmatprep.subr.mxu0 %v475
        %603 = vmatpush1.msra.mxu0 %v474
        %604 = vmatprep.subr.mxu0 %v477
        %605 = vmatpush1.msra.mxu0 %v476
        %606 = vmatprep.subr.mxu0 %v479
        %607 = vmatpush1.msra.mxu0 %v478
        %608 = vmatprep.subr.mxu0 %v481
        %609 = vmatpush1.msra.mxu0 %v480
        %610 = vmatprep.subr.mxu0 %v483
        %611 = vmatpush1.msra.mxu0 %v482
        %612 = vmatprep.subr.mxu0 %v485
        %613 = vmatpush1.msra.mxu0 %v484
        %614 = vmatprep.subr.mxu0 %v487
        %615 = vmatpush1.msra.mxu0 %v486
        %616 = vmatprep.subr.mxu0 %v489
        %617 = vmatpush1.msra.mxu0 %v488
        %618 = vmatprep.subr.mxu0 %v491
        %619 = vmatpush1.msra.mxu0 %v490
        %620 = vmatprep.subr.mxu0 %v493
        %621 = vmatpush1.msra.mxu0 %v492
        %622 = vmatprep.subr.mxu0 %v495
        %623 = vmatpush1.msra.mxu0 %v494
        %624 = vmatprep.subr.mxu0 %v497
        %625 = vmatpush1.msra.mxu0 %v496
        %626 = vmatprep.subr.mxu0 %v499
        %627 = vmatpush1.msra.mxu0 %v498
        %628 = vmatprep.subr.mxu0 %v501
        %629 = vmatpush1.msra.mxu0 %v500
        %630 = vmatprep.subr.mxu0 %v503
        %631 = vmatpush1.msra.mxu0 %v502
        %632 = vmatprep.subr.mxu0 %v505
        %633 = vmatpush1.msra.mxu0 %v504
        %634 = vmatprep.subr.mxu0 %v507
        %635 = vmatpush1.msra.mxu0 %v506
        %636 = vmatprep.subr.mxu0 %v509
        %637 = vmatpush1.msra.mxu0 %v508
        %638 = vmatprep.subr.mxu0 %v511
        %639 = vmatpush1.msra.mxu0 %v510
        %640 = vmatprep.subr.mxu0 %v513
        %641 = vmatpush1.msra.mxu0 %v512
        %642 = vmatprep.subr.mxu0 %v515
        %643 = vmatpush1.msra.mxu0 %v514
        %644 = vmatprep.subr.mxu0 %v517
        %645 = vmatpush1.msra.mxu0 %v516
        %646 = vmatprep.subr.mxu0 %v519
        %647 = vmatpush1.msra.mxu0 %v518
        %648 = vmatprep.subr.mxu0 %v521
        %649 = vmatpush1.msra.mxu0 %v520
        %650 = vmatprep.subr.mxu0 %v523
        %651 = vmatpush1.msra.mxu0 %v522
        %652 = vmatprep.subr.mxu0 %v525
        %653 = vmatpush1.msra.mxu0 %v524
        %654 = vmatprep.mubr.f32.mxu0 %v459
        %655 = vmatmul.mubr.f32.gmra.mrb[0].mxu0 %v458
        %v656 = vpop.f32.mrb[0].mxu0
        %v657 = vadd.f32 0.0, %v656
        %v658 = vpop.f32.mrb[0].mxu0
        %v659 = vadd.f32 0.0, %v658
        %660 = vdwg.mxu0
        %661 = vmatprep.subr.mxu0 %v527
        %662 = vmatpush1.msra.mxu0 %v526
        %663 = vmatprep.subr.mxu0 %v529
        %664 = vmatpush1.msra.mxu0 %v528
        %665 = vmatprep.subr.mxu0 %v531
        %666 = vmatpush1.msra.mxu0 %v530
        %667 = vmatprep.subr.mxu0 %v533
        %668 = vmatpush1.msra.mxu0 %v532
        %669 = vmatprep.subr.mxu0 %v535
        %670 = vmatpush1.msra.mxu0 %v534
        %671 = vmatprep.subr.mxu0 %v537
        %672 = vmatpush1.msra.mxu0 %v536
        %673 = vmatprep.subr.mxu0 %v539
        %674 = vmatpush1.msra.mxu0 %v538
        %675 = vmatprep.subr.mxu0 %v541
        %676 = vmatpush1.msra.mxu0 %v540
        %677 = vmatprep.subr.mxu0 %v543
        %678 = vmatpush1.msra.mxu0 %v542
        %679 = vmatprep.subr.mxu0 %v545
        %680 = vmatpush1.msra.mxu0 %v544
        %681 = vmatprep.subr.mxu0 %v547
        %682 = vmatpush1.msra.mxu0 %v546
        %683 = vmatprep.subr.mxu0 %v549
        %684 = vmatpush1.msra.mxu0 %v548
        %685 = vmatprep.subr.mxu0 %v551
        %686 = vmatpush1.msra.mxu0 %v550
        %687 = vmatprep.subr.mxu0 %v553
        %688 = vmatpush1.msra.mxu0 %v552
        %689 = vmatprep.subr.mxu0 %v555
        %690 = vmatpush1.msra.mxu0 %v554
        %691 = vmatprep.subr.mxu0 %v557
        %692 = vmatpush1.msra.mxu0 %v556
        %693 = vmatprep.subr.mxu0 %v559
        %694 = vmatpush1.msra.mxu0 %v558
        %695 = vmatprep.subr.mxu0 %v561
        %696 = vmatpush1.msra.mxu0 %v560
        %697 = vmatprep.subr.mxu0 %v563
        %698 = vmatpush1.msra.mxu0 %v562
        %699 = vmatprep.subr.mxu0 %v565
        %700 = vmatpush1.msra.mxu0 %v564
        %701 = vmatprep.subr.mxu0 %v567
        %702 = vmatpush1.msra.mxu0 %v566
        %703 = vmatprep.subr.mxu0 %v569
        %704 = vmatpush1.msra.mxu0 %v568
        %705 = vmatprep.subr.mxu0 %v571
        %706 = vmatpush1.msra.mxu0 %v570
        %707 = vmatprep.subr.mxu0 %v573
        %708 = vmatpush1.msra.mxu0 %v572
        %709 = vmatprep.subr.mxu0 %v575
        %710 = vmatpush1.msra.mxu0 %v574
        %711 = vmatprep.subr.mxu0 %v577
        %712 = vmatpush1.msra.mxu0 %v576
        %713 = vmatprep.subr.mxu0 %v579
        %714 = vmatpush1.msra.mxu0 %v578
        %715 = vmatprep.subr.mxu0 %v581
        %716 = vmatpush1.msra.mxu0 %v580
        %717 = vmatprep.subr.mxu0 %v583
        %718 = vmatpush1.msra.mxu0 %v582
        %719 = vmatprep.subr.mxu0 %v585
        %720 = vmatpush1.msra.mxu0 %v584
        %721 = vmatprep.subr.mxu0 %v587
        %722 = vmatpush1.msra.mxu0 %v586
        %723 = vmatprep.subr.mxu0 %v589
        %724 = vmatpush1.msra.mxu0 %v588
        %725 = vmatprep.mubr.f32.mxu0 %v461
        %726 = vmatmul.mubr.f32.gmra.mrb[0].mxu0 %v460
        %v727 = vpop.f32.mrb[0].mxu0
        %v728 = vadd.f32 %v657, %v727
        %v729 = vpop.f32.mrb[0].mxu0
        %v730 = vadd.f32 %v659, %v729
        %731 = vdwg.mxu0
        %732 = vst [vmem:[%s452] sm:$0xff] %v728
        %733 = vst [vmem:[%s452 + $0x8] sm:$0xff] %v730
        %v734 = vadd.f32 %v728, %v730
        %735 = vadd.xlane.f32.xlu0 %v734
        %v736 = vpop.xlane.xlu0 %735
        %v737 = vmul.f32 %v736, 0.00390625
        %v738 = vsub.f32 %v728, %v737
        %v739 = vsub.f32 %v730, %v737
        %v740 = vmul.f32 %v738, %v738
        %v741 = vmul.f32 %v739, %v739
        %v742 = vadd.f32 %v740, %v741
        %743 = vadd.xlane.f32.xlu0 %v742
        %v744 = vpop.xlane.xlu0 %743
        %vm745 = vcmask 7168
        %v746 = vsel %vm745, %v736, %v744
        %vm747 = vcmask 15360
        %748 = vst.msk [vmem:[%s457] sm:$0xff] %vm747, %v746
        %s749 = smul.u32 2, %s15
        %p750 = scmp.lt.s32.totalorder %s749, 7
        %s751 = scalar_select %p750, %s749, 7
        %s752 = smul.addr %s751, 8
        %s753 = scalar_lea.vmem %s2, %s752
        %p754 = scmp.lt.s32.totalorder %s15, 3
        %s755 = scalar_select %p754, %s15, 3
        %s756 = smul.addr %s755, 8
        %s757 = scalar_lea.vmem %s3, %s756
        // Predicated region
        $region52: #{seghead_forward.3} parent=46 // pred_check
          %p758 = pneg %p80
        $region53: #{seghead_forward.3} parent=46 // pred_check_branch
          %760 = sbr.rel (%p758) target = $region55
        $region54: #{seghead_forward.3} parent=46 // pred_region
          %s761 = smul.u32 2, %s15
        $region55: #{seghead_forward.3} parent=46 // pred_fallthru
          _
        // Predicated region
        $region56: #{seghead_forward.3} parent=46 // pred_check
          %p762 = pneg %p106
        $region57: #{seghead_forward.3} parent=46 // pred_check_branch
          %764 = sbr.rel (%p762) target = $region59
        $region58: #{seghead_forward.3} parent=46 // pred_region
          _
        $region59: #{seghead_forward.3} parent=46 // pred_fallthru
          _
      $region47: #{seghead_forward.3} parent=5 // pred_fallthru
        _
      %p765 = scmp.le.s32.totalorder 2, %s10
      // Predicated region
      $region60: #{seghead_forward.3} parent=5 // pred_check
        %p766 = pneg %p765
      $region61: #{seghead_forward.3} parent=5 // pred_check_branch
        %768 = sbr.rel (%p766) target = $region63
      $region62: #{seghead_forward.3} parent=5 // pred_region
        %s769 = ssub.s32 %s10, 2
        // Predicated region
        $region64: #{seghead_forward.3} parent=62 // pred_check
          %p770 = pneg %p86
        $region65: #{seghead_forward.3} parent=62 // pred_check_branch
          %772 = sbr.rel (%p770) target = $region67
        $region66: #{seghead_forward.3} parent=62 // pred_region
          %s773 = smul.u32 2, %s16
          %p774 = scmp.lt.s32.totalorder %s773, 7
          %s775 = scalar_select %p774, %s773, 7
          %s776 = smul.addr %s775, 8
          %s777 = scalar_lea.vmem %s2, %s776
        $region67: #{seghead_forward.3} parent=62 // pred_fallthru
          _
        // Predicated region
        $region68: #{seghead_forward.3} parent=62 // pred_check
          %p778 = pneg %p112
        $region69: #{seghead_forward.3} parent=62 // pred_check_branch
          %780 = sbr.rel (%p778) target = $region71
        $region70: #{seghead_forward.3} parent=62 // pred_region
          %p781 = scmp.lt.s32.totalorder %s16, 3
          %s782 = scalar_select %p781, %s16, 3
          %s783 = smul.addr %s782, 8
          %s784 = scalar_lea.vmem %s3, %s783
        $region71: #{seghead_forward.3} parent=62 // pred_fallthru
          _
      $region63: #{seghead_forward.3} parent=5 // pred_fallthru
        _
    $region6: #{seghead_forward.3} parent=1 // loop_footer
      %s14 = sadd.s32 1, %s10
    $region7: #{seghead_forward.3} parent=1 // loop_footer_branch
      %9 = sbr.rel target = $region3
    $region8: #{seghead_forward.3} parent=1 // loop_exit
      _

// kernel: seghead_forward.4
$region0: #{seghead_forward.4}
  #allocation0 [shape = 'u32[]', space=smem, size = 0x4, offset = 0x4, fixed_abs, tag = 'smem constant byte address 0x4 - core index']
  #allocation1 [shape = 'u32[144,128]{1,0:T(1,128)}', space=vmem, size = 0x12000, scoped, tag = 'internal scratch']
  %s0 = inlined_call_operand.vmem [shape: f32[8,1], index: 0, kind: input, shape index: {}]
  %s1 = inlined_call_operand.vmem [shape: f32[8,1], index: 1, kind: input, shape index: {}]
  %s2 = inlined_call_operand.vmem [shape: f32[8,1024], index: 2, kind: input, shape index: {}]
  %s3 = inlined_call_operand.vmem [shape: f32[8,1024], index: 3, kind: output, shape index: {0}]
  %s4 = inlined_call_operand.vmem [shape: f32[4,8,2], index: 4, kind: output, shape index: {1}]
  %5 = xla_tuple %s3, %s4
  %s6 = sld [smem:[#allocation0]]
  $region53: #{seghead_forward.4} parent=0
    _
  %s8 = ssub.s32 1, %s6
  %s9 = scalar_select 0, %s8, %s6
  loop: start=0, step=1, limit=6
  $region2: #{seghead_forward.4} parent=0 // loop_pre_header
    _
  $region3: #{seghead_forward.4} parent=0 // loop_header
    %s11 = sphi 0, %s15
    %p12 = scmp.ge.s32.totalorder %s11, 6
    %s19 = sphi 0, %s19
    %s21 = sphi 0, %s19
    %s22 = sphi 0, %s21
    %s36 = sphi 0, %s22
    %s40 = sphi 0, %s40
    %s42 = sphi 0, %s40
    %s43 = sphi 0, %s42
    %s57 = sphi 0, %s43
    %s63 = sphi 0, %s65
    %s66 = sphi 0, %s63
    %s67 = sphi 0, %s66
    %s83 = sphi 0, %s67
    %s89 = sphi 0, %s91
    %s92 = sphi 0, %s89
    %s93 = sphi 0, %s92
    %s109 = sphi 0, %s93
    %s115 = sphi 0, %s117
    %s118 = sphi 0, %s115
    %s119 = sphi 0, %s118
    %s135 = sphi 0, %s119
  $region4: #{seghead_forward.4} parent=0 // loop_header_branch
    %14 = sbr.rel (%p12) target = $region8
  $region5: #{seghead_forward.4} parent=0 // loop_body
    %s16 = ssub.s32 %s11, 1
    %s17 = ssub.s32 %s11, 2
    %s18 = sadd.s32 %s11, 1
    %s20 = sadd.s32 %s19, 1
    %p23 = scmp.eq.s32.totalorder %s11, 3
    %p24 = scmp.ne.s32.totalorder %s19, %s21
    %p25 = scmp.eq.s32.totalorder %s11, 0
    %p26 = por %p24, %p25
    %p27 = scmp.ne.s32.totalorder %s19, %s21
    %p28 = scmp.eq.s32.totalorder %s16, 3
    %p29 = por %p27, %p28
    %p30 = scmp.ne.s32.totalorder %s21, %s22
    %p31 = scmp.eq.s32.totalorder %s16, 0
    %p32 = por %p30, %p31
    %p33 = scmp.ne.s32.totalorder %s21, %s22
    %p34 = scmp.eq.s32.totalorder %s17, 3
    %p35 = por %p33, %p34
    %p37 = scmp.ne.s32.totalorder %s22, %s36
    %p38 = scmp.eq.s32.totalorder %s17, 0
    %p39 = por %p37, %p38
    %s41 = sadd.s32 %s40, 1
    %p44 = scmp.eq.s32.totalorder %s11, 3
    %p45 = scmp.ne.s32.totalorder %s40, %s42
    %p46 = scmp.eq.s32.totalorder %s11, 0
    %p47 = por %p45, %p46
    %p48 = scmp.ne.s32.totalorder %s40, %s42
    %p49 = scmp.eq.s32.totalorder %s16, 3
    %p50 = por %p48, %p49
    %p51 = scmp.ne.s32.totalorder %s42, %s43
    %p52 = scmp.eq.s32.totalorder %s16, 0
    %p53 = por %p51, %p52
    %p54 = scmp.ne.s32.totalorder %s42, %s43
    %p55 = scmp.eq.s32.totalorder %s17, 3
    %p56 = por %p54, %p55
    %p58 = scmp.ne.s32.totalorder %s43, %s57
    %p59 = scmp.eq.s32.totalorder %s17, 0
    %p60 = por %p58, %p59
    %s61 = ssub.s32 %s11, %s18
    %p62 = scmp.eq.s32.totalorder %s61, 0
    %s64 = sadd.s32 %s63, 1
    %s65 = scalar_select %p62, %s63, %s64
    %p68 = pneg %p62
    %p69 = scmp.eq.s32.totalorder %s11, 3
    %p70 = por %p68, %p69
    %p71 = scmp.ne.s32.totalorder %s63, %s66
    %p72 = scmp.eq.s32.totalorder %s11, 0
    %p73 = por %p71, %p72
    %p74 = scmp.ne.s32.totalorder %s63, %s66
    %p75 = scmp.eq.s32.totalorder %s16, 3
    %p76 = por %p74, %p75
    %p77 = scmp.ne.s32.totalorder %s66, %s67
    %p78 = scmp.eq.s32.totalorder %s16, 0
    %p79 = por %p77, %p78
    %p80 = scmp.ne.s32.totalorder %s66, %s67
    %p81 = scmp.eq.s32.totalorder %s17, 3
    %p82 = por %p80, %p81
    %p84 = scmp.ne.s32.totalorder %s67, %s83
    %p85 = scmp.eq.s32.totalorder %s17, 0
    %p86 = por %p84, %p85
    %s87 = ssub.s32 %s11, %s18
    %p88 = scmp.eq.s32.totalorder %s87, 0
    %s90 = sadd.s32 %s89, 1
    %s91 = scalar_select %p88, %s89, %s90
    %p94 = pneg %p88
    %p95 = scmp.eq.s32.totalorder %s11, 3
    %p96 = por %p94, %p95
    %p97 = scmp.ne.s32.totalorder %s89, %s92
    %p98 = scmp.eq.s32.totalorder %s11, 0
    %p99 = por %p97, %p98
    %p100 = scmp.ne.s32.totalorder %s89, %s92
    %p101 = scmp.eq.s32.totalorder %s16, 3
    %p102 = por %p100, %p101
    %p103 = scmp.ne.s32.totalorder %s92, %s93
    %p104 = scmp.eq.s32.totalorder %s16, 0
    %p105 = por %p103, %p104
    %p106 = scmp.ne.s32.totalorder %s92, %s93
    %p107 = scmp.eq.s32.totalorder %s17, 3
    %p108 = por %p106, %p107
    %p110 = scmp.ne.s32.totalorder %s93, %s109
    %p111 = scmp.eq.s32.totalorder %s17, 0
    %p112 = por %p110, %p111
    %s113 = ssub.s32 %s11, %s18
    %p114 = scmp.eq.s32.totalorder %s113, 0
    %s116 = sadd.s32 %s115, 1
    %s117 = scalar_select %p114, %s115, %s116
    %p120 = pneg %p114
    %p121 = scmp.eq.s32.totalorder %s11, 3
    %p122 = por %p120, %p121
    %p123 = scmp.ne.s32.totalorder %s115, %s118
    %p124 = scmp.eq.s32.totalorder %s11, 0
    %p125 = por %p123, %p124
    %p126 = scmp.ne.s32.totalorder %s115, %s118
    %p127 = scmp.eq.s32.totalorder %s16, 3
    %p128 = por %p126, %p127
    %p129 = scmp.ne.s32.totalorder %s118, %s119
    %p130 = scmp.eq.s32.totalorder %s16, 0
    %p131 = por %p129, %p130
    %p132 = scmp.ne.s32.totalorder %s118, %s119
    %p133 = scmp.eq.s32.totalorder %s17, 3
    %p134 = por %p132, %p133
    %p136 = scmp.ne.s32.totalorder %s119, %s135
    %p137 = scmp.eq.s32.totalorder %s17, 0
    %p138 = por %p136, %p137
    %p139 = scmp.le.s32.totalorder 1, %s11
    %p140 = scmp.lt.s32.totalorder %s11, 5
    %p141 = pnand %p139, %p140
    %p142 = pneg %p141
    // Predicated region
    $region9: #{seghead_forward.4} parent=5 // pred_check
      _
    $region10: #{seghead_forward.4} parent=5 // pred_check_branch
      %144 = sbr.rel (%p141) target = $region12
    $region11: #{seghead_forward.4} parent=5 // pred_region
      %s145 = ssub.s32 %s11, 1
      // Predicated region
      $region13: #{seghead_forward.4} parent=11 // pred_check
        %p146 = pneg %p32
      $region14: #{seghead_forward.4} parent=11 // pred_check_branch
        %148 = sbr.rel (%p146) target = $region16
      $region15: #{seghead_forward.4} parent=11 // pred_region
        _
      $region16: #{seghead_forward.4} parent=11 // pred_fallthru
        _
      // Predicated region
      $region17: #{seghead_forward.4} parent=11 // pred_check
        %p149 = pneg %p53
      $region18: #{seghead_forward.4} parent=11 // pred_check_branch
        %151 = sbr.rel (%p149) target = $region20
      $region19: #{seghead_forward.4} parent=11 // pred_region
        _
      $region20: #{seghead_forward.4} parent=11 // pred_fallthru
        _
    $region12: #{seghead_forward.4} parent=5 // pred_fallthru
      _
    %p152 = scmp.lt.s32.totalorder %s11, 4
    // Predicated region
    $region21: #{seghead_forward.4} parent=5 // pred_check
      %p153 = pneg %p152
    $region22: #{seghead_forward.4} parent=5 // pred_check_branch
      %155 = sbr.rel (%p153) target = $region24
    $region23: #{seghead_forward.4} parent=5 // pred_region
      // Predicated region
      $region25: #{seghead_forward.4} parent=23 // pred_check
        %p156 = pneg %p73
      $region26: #{seghead_forward.4} parent=23 // pred_check_branch
        %158 = sbr.rel (%p156) target = $region28
      $region27: #{seghead_forward.4} parent=23 // pred_region
        %s159 = smul.u32 2, %s11
        %p160 = scmp.lt.s32.totalorder %s159, 7
        %s161 = scalar_select %p160, %s159, 7
        %s162 = smul.addr %s161, 8
        %s163 = scalar_lea.vmem %s2, %s162
        %s164 = smul.u32 2, %s11
      $region28: #{seghead_forward.4} parent=23 // pred_fallthru
        _
    $region24: #{seghead_forward.4} parent=5 // pred_fallthru
      _
    %p165 = scmp.le.s32.totalorder 1, %s11
    %p166 = scmp.lt.s32.totalorder %s11, 5
    %p167 = pnand %p165, %p166
    %p168 = pneg %p167
    // Predicated region
    $region29: #{seghead_forward.4} parent=5 // pred_check
      _
    $region30: #{seghead_forward.4} parent=5 // pred_check_branch
      %170 = sbr.rel (%p167) target = $region32
    $region31: #{seghead_forward.4} parent=5 // pred_region
      %s171 = ssub.s32 %s11, 1
      %p172 = pneg %p32
      %p173 = pneg %p29
      %p174 = pneg %p53
      %p175 = pneg %p50
      %s176 = smul.u32 2, %s16
      %p177 = scmp.lt.s32.totalorder %s176, 7
      %s178 = scalar_select %p177, %s176, 7
      %s179 = smul.addr %s178, 8
      %s180 = scalar_lea.vmem %s2, %s179
      %p181 = pneg %p79
      %p182 = pneg %p76
      %p183 = pneg %p105
      %p184 = pneg %p102
      %s185 = smul.u32 2, %s16
      %p186 = scmp.lt.s32.totalorder %s185, 7
      %s187 = scalar_select %p186, %s185, 7
      %s188 = smul.addr %s187, 8
      %s189 = scalar_lea.vmem %s3, %s188
      %p190 = pneg %p131
      %p191 = pneg %p128
      %p192 = scmp.lt.s32.totalorder %s16, 3
      %s193 = scalar_select %p192, %s16, 3
      %s194 = smul.addr %s193, 8
      %s195 = scalar_lea.vmem %s4, %s194
      %s196 = smul.u32 2, %s16
      %p197 = scmp.lt.s32.totalorder %s196, 7
      %s198 = scalar_select %p197, %s196, 7
      %s199 = smul.addr %s198, 8
      %s200 = scalar_lea.vmem %s2, %s199
      %s201 = smul.u32 2, %s16
      %s202 = smul.u32 2, %s16
      %p203 = scmp.lt.s32.totalorder %s202, 7
      %s204 = scalar_select %p203, %s202, 7
      %s205 = smul.addr %s204, 8
      %s206 = scalar_lea.vmem %s3, %s205
      %s207 = smul.u32 2, %s16
      %p208 = scmp.lt.s32.totalorder %s16, 3
      %s209 = scalar_select %p208, %s16, 3
      %s210 = smul.addr %s209, 8
      %s211 = scalar_lea.vmem %s4, %s210
      %v212 = vld [vmem:[%s200] sm:$0xff]
      %v213 = vld [vmem:[%s200 + $0x8] sm:$0xff]
      %v214 = vld [vmem:[%s0] sm:$0xff]
      %216 = vset.pattern.permute.xlu0 0
      %217 = vperm.xlu0 %216, %v214
      %v218 = vpop.permute.xlu0 %217
      %v220 = vmul.f32 %v212, %v218
      %v221 = vmul.f32 %v213, %v218
      %v222 = vld [vmem:[%s1] sm:$0xff]
      %224 = vset.pattern.permute.xlu0 0
      %225 = vperm.xlu0 %224, %v222
      %v226 = vpop.permute.xlu0 %225
      %v228 = vadd.f32 %v220, %v226
      %v229 = vadd.f32 %v221, %v226
      %v230 = vmul.f32 %v228, 0.5
      %v231 = vmul.f32 %v229, 0.5
      %v232 = vtanh.pop %v230
      %v233 = vtanh.pop %v231
      %vm234 = vcmp.gt.f32.partialorder %v228, 0.0
      %vm235 = vcmp.gt.f32.partialorder %v229, 0.0
      %v236 = vmul.f32 %v232, 2.0
      %v237 = vmul.f32 %v233, 2.0
      %v238 = vsub.f32 1.0, %v232
      %v239 = vsub.f32 1.0, %v233
      %v240 = vrcp.pop %v238
      %v241 = vmul.f32 %v236, %v240
      %v242 = vrcp.pop %v239
      %v243 = vmul.f32 %v237, %v242
      %v244 = vsel %vm234, %v228, %v241
      %v245 = vsel %vm235, %v229, %v243
      %246 = vst [vmem:[%s206] sm:$0xff] %v244
      %247 = vst [vmem:[%s206 + $0x8] sm:$0xff] %v245
      %v248 = vadd.f32 %v244, %v245
      %249 = vadd.xlane.f32.xlu0 %v248
      %v250 = vpop.xlane.xlu0 %249
      %v251 = vmul.f32 %v250, 0.00390625
      %v252 = vsub.f32 %v244, %v251
      %v253 = vsub.f32 %v245, %v251
      %v254 = vmul.f32 %v252, %v252
      %v255 = vmul.f32 %v253, %v253
      %v256 = vadd.f32 %v254, %v255
      %257 = vadd.xlane.f32.xlu0 %v256
      %v258 = vpop.xlane.xlu0 %257
      %vm259 = vcmask 7168
      %v260 = vsel %vm259, %v250, %v258
      %vm261 = vcmask 15360
      %262 = vst.msk [vmem:[%s211] sm:$0xff] %vm261, %v260
      %s263 = smul.u32 2, %s16
      %p264 = scmp.lt.s32.totalorder %s263, 7
      %s265 = scalar_select %p264, %s263, 7
      %s266 = smul.addr %s265, 8
      %s267 = scalar_lea.vmem %s3, %s266
      %p268 = scmp.lt.s32.totalorder %s16, 3
      %s269 = scalar_select %p268, %s16, 3
      %s270 = smul.addr %s269, 8
      %s271 = scalar_lea.vmem %s4, %s270
      // Predicated region
      $region33: #{seghead_forward.4} parent=31 // pred_check
        %p272 = pneg %p102
      $region34: #{seghead_forward.4} parent=31 // pred_check_branch
        %274 = sbr.rel (%p272) target = $region36
      $region35: #{seghead_forward.4} parent=31 // pred_region
        %s275 = smul.u32 2, %s16
      $region36: #{seghead_forward.4} parent=31 // pred_fallthru
        _
      // Predicated region
      $region37: #{seghead_forward.4} parent=31 // pred_check
        %p276 = pneg %p128
      $region38: #{seghead_forward.4} parent=31 // pred_check_branch
        %278 = sbr.rel (%p276) target = $region40
      $region39: #{seghead_forward.4} parent=31 // pred_region
        _
      $region40: #{seghead_forward.4} parent=31 // pred_fallthru
        _
    $region32: #{seghead_forward.4} parent=5 // pred_fallthru
      _
    %p279 = scmp.le.s32.totalorder 2, %s11
    // Predicated region
    $region41: #{seghead_forward.4} parent=5 // pred_check
      %p280 = pneg %p279
    $region42: #{seghead_forward.4} parent=5 // pred_check_branch
      %282 = sbr.rel (%p280) target = $region44
    $region43: #{seghead_forward.4} parent=5 // pred_region
      %s283 = ssub.s32 %s11, 2
      // Predicated region
      $region45: #{seghead_forward.4} parent=43 // pred_check
        %p284 = pneg %p108
      $region46: #{seghead_forward.4} parent=43 // pred_check_branch
        %286 = sbr.rel (%p284) target = $region48
      $region47: #{seghead_forward.4} parent=43 // pred_region
        %s287 = smul.u32 2, %s17
        %p288 = scmp.lt.s32.totalorder %s287, 7
        %s289 = scalar_select %p288, %s287, 7
        %s290 = smul.addr %s289, 8
        %s291 = scalar_lea.vmem %s3, %s290
      $region48: #{seghead_forward.4} parent=43 // pred_fallthru
        _
      // Predicated region
      $region49: #{seghead_forward.4} parent=43 // pred_check
        %p292 = pneg %p134
      $region50: #{seghead_forward.4} parent=43 // pred_check_branch
        %294 = sbr.rel (%p292) target = $region52
      $region51: #{seghead_forward.4} parent=43 // pred_region
        %p295 = scmp.lt.s32.totalorder %s17, 3
        %s296 = scalar_select %p295, %s17, 3
        %s297 = smul.addr %s296, 8
        %s298 = scalar_lea.vmem %s4, %s297
      $region52: #{seghead_forward.4} parent=43 // pred_fallthru
        _
    $region44: #{seghead_forward.4} parent=5 // pred_fallthru
      _
  $region6: #{seghead_forward.4} parent=0 // loop_footer
    %s15 = sadd.s32 1, %s11
  $region7: #{seghead_forward.4} parent=0 // loop_footer_branch
    %10 = sbr.rel target = $region3
  $region8: #{seghead_forward.4} parent=0 // loop_exit
    _

// kernel: seghead_forward.5
$region0: #{seghead_forward.5}
  #allocation0 [shape = 'u32[]', space=smem, size = 0x4, offset = 0x4, fixed_abs, tag = 'smem constant byte address 0x4 - core index']
  #allocation1 [shape = 'u32[144,128]{1,0:T(1,128)}', space=vmem, size = 0x12000, scoped, tag = 'internal scratch']
  %s0 = inlined_call_operand.vmem [shape: f32[8,1], index: 0, kind: input, shape index: {}]
  %s1 = inlined_call_operand.vmem [shape: f32[8,1], index: 1, kind: input, shape index: {}]
  %s2 = inlined_call_operand.vmem [shape: f32[8,8], index: 2, kind: input, shape index: {}]
  %s3 = inlined_call_operand.vmem [shape: f32[8,1], index: 3, kind: input, shape index: {}]
  %s4 = inlined_call_operand.vmem [shape: f32[8,1024], index: 4, kind: input, shape index: {}]
  %s5 = inlined_call_operand.vmem [shape: f32[8,1024], index: 5, kind: output, shape index: {}]
  %s6 = sld [smem:[#allocation0]]
  $region53: #{seghead_forward.5} parent=0
    _
  %s8 = ssub.s32 1, %s6
  %s9 = scalar_select 0, %s8, %s6
  loop: start=0, step=1, limit=6
  $region2: #{seghead_forward.5} parent=0 // loop_pre_header
    _
  $region3: #{seghead_forward.5} parent=0 // loop_header
    %s11 = sphi 0, %s15
    %p12 = scmp.ge.s32.totalorder %s11, 6
    %s19 = sphi 0, %s19
    %s21 = sphi 0, %s19
    %s22 = sphi 0, %s21
    %s36 = sphi 0, %s22
    %s40 = sphi 0, %s40
    %s42 = sphi 0, %s40
    %s43 = sphi 0, %s42
    %s57 = sphi 0, %s43
    %s61 = sphi 0, %s61
    %s63 = sphi 0, %s61
    %s64 = sphi 0, %s63
    %s78 = sphi 0, %s64
    %s82 = sphi 0, %s82
    %s84 = sphi 0, %s82
    %s85 = sphi 0, %s84
    %s99 = sphi 0, %s85
    %s105 = sphi 0, %s107
    %s108 = sphi 0, %s105
    %s109 = sphi 0, %s108
    %s125 = sphi 0, %s109
    %s131 = sphi 0, %s133
    %s134 = sphi 0, %s131
    %s135 = sphi 0, %s134
    %s151 = sphi 0, %s135
  $region4: #{seghead_forward.5} parent=0 // loop_header_branch
    %14 = sbr.rel (%p12) target = $region8
  $region5: #{seghead_forward.5} parent=0 // loop_body
    %s16 = ssub.s32 %s11, 1
    %s17 = ssub.s32 %s11, 2
    %s18 = sadd.s32 %s11, 1
    %s20 = sadd.s32 %s19, 1
    %p23 = scmp.eq.s32.totalorder %s11, 3
    %p24 = scmp.ne.s32.totalorder %s19, %s21
    %p25 = scmp.eq.s32.totalorder %s11, 0
    %p26 = por %p24, %p25
    %p27 = scmp.ne.s32.totalorder %s19, %s21
    %p28 = scmp.eq.s32.totalorder %s16, 3
    %p29 = por %p27, %p28
    %p30 = scmp.ne.s32.totalorder %s21, %s22
    %p31 = scmp.eq.s32.totalorder %s16, 0
    %p32 = por %p30, %p31
    %p33 = scmp.ne.s32.totalorder %s21, %s22
    %p34 = scmp.eq.s32.totalorder %s17, 3
    %p35 = por %p33, %p34
    %p37 = scmp.ne.s32.totalorder %s22, %s36
    %p38 = scmp.eq.s32.totalorder %s17, 0
    %p39 = por %p37, %p38
    %s41 = sadd.s32 %s40, 1
    %p44 = scmp.eq.s32.totalorder %s11, 3
    %p45 = scmp.ne.s32.totalorder %s40, %s42
    %p46 = scmp.eq.s32.totalorder %s11, 0
    %p47 = por %p45, %p46
    %p48 = scmp.ne.s32.totalorder %s40, %s42
    %p49 = scmp.eq.s32.totalorder %s16, 3
    %p50 = por %p48, %p49
    %p51 = scmp.ne.s32.totalorder %s42, %s43
    %p52 = scmp.eq.s32.totalorder %s16, 0
    %p53 = por %p51, %p52
    %p54 = scmp.ne.s32.totalorder %s42, %s43
    %p55 = scmp.eq.s32.totalorder %s17, 3
    %p56 = por %p54, %p55
    %p58 = scmp.ne.s32.totalorder %s43, %s57
    %p59 = scmp.eq.s32.totalorder %s17, 0
    %p60 = por %p58, %p59
    %s62 = sadd.s32 %s61, 1
    %p65 = scmp.eq.s32.totalorder %s11, 3
    %p66 = scmp.ne.s32.totalorder %s61, %s63
    %p67 = scmp.eq.s32.totalorder %s11, 0
    %p68 = por %p66, %p67
    %p69 = scmp.ne.s32.totalorder %s61, %s63
    %p70 = scmp.eq.s32.totalorder %s16, 3
    %p71 = por %p69, %p70
    %p72 = scmp.ne.s32.totalorder %s63, %s64
    %p73 = scmp.eq.s32.totalorder %s16, 0
    %p74 = por %p72, %p73
    %p75 = scmp.ne.s32.totalorder %s63, %s64
    %p76 = scmp.eq.s32.totalorder %s17, 3
    %p77 = por %p75, %p76
    %p79 = scmp.ne.s32.totalorder %s64, %s78
    %p80 = scmp.eq.s32.totalorder %s17, 0
    %p81 = por %p79, %p80
    %s83 = sadd.s32 %s82, 1
    %p86 = scmp.eq.s32.totalorder %s11, 3
    %p87 = scmp.ne.s32.totalorder %s82, %s84
    %p88 = scmp.eq.s32.totalorder %s11, 0
    %p89 = por %p87, %p88
    %p90 = scmp.ne.s32.totalorder %s82, %s84
    %p91 = scmp.eq.s32.totalorder %s16, 3
    %p92 = por %p90, %p91
    %p93 = scmp.ne.s32.totalorder %s84, %s85
    %p94 = scmp.eq.s32.totalorder %s16, 0
    %p95 = por %p93, %p94
    %p96 = scmp.ne.s32.totalorder %s84, %s85
    %p97 = scmp.eq.s32.totalorder %s17, 3
    %p98 = por %p96, %p97
    %p100 = scmp.ne.s32.totalorder %s85, %s99
    %p101 = scmp.eq.s32.totalorder %s17, 0
    %p102 = por %p100, %p101
    %s103 = ssub.s32 %s11, %s18
    %p104 = scmp.eq.s32.totalorder %s103, 0
    %s106 = sadd.s32 %s105, 1
    %s107 = scalar_select %p104, %s105, %s106
    %p110 = pneg %p104
    %p111 = scmp.eq.s32.totalorder %s11, 3
    %p112 = por %p110, %p111
    %p113 = scmp.ne.s32.totalorder %s105, %s108
    %p114 = scmp.eq.s32.totalorder %s11, 0
    %p115 = por %p113, %p114
    %p116 = scmp.ne.s32.totalorder %s105, %s108
    %p117 = scmp.eq.s32.totalorder %s16, 3
    %p118 = por %p116, %p117
    %p119 = scmp.ne.s32.totalorder %s108, %s109
    %p120 = scmp.eq.s32.totalorder %s16, 0
    %p121 = por %p119, %p120
    %p122 = scmp.ne.s32.totalorder %s108, %s109
    %p123 = scmp.eq.s32.totalorder %s17, 3
    %p124 = por %p122, %p123
    %p126 = scmp.ne.s32.totalorder %s109, %s125
    %p127 = scmp.eq.s32.totalorder %s17, 0
    %p128 = por %p126, %p127
    %s129 = ssub.s32 %s11, %s18
    %p130 = scmp.eq.s32.totalorder %s129, 0
    %s132 = sadd.s32 %s131, 1
    %s133 = scalar_select %p130, %s131, %s132
    %p136 = pneg %p130
    %p137 = scmp.eq.s32.totalorder %s11, 3
    %p138 = por %p136, %p137
    %p139 = scmp.ne.s32.totalorder %s131, %s134
    %p140 = scmp.eq.s32.totalorder %s11, 0
    %p141 = por %p139, %p140
    %p142 = scmp.ne.s32.totalorder %s131, %s134
    %p143 = scmp.eq.s32.totalorder %s16, 3
    %p144 = por %p142, %p143
    %p145 = scmp.ne.s32.totalorder %s134, %s135
    %p146 = scmp.eq.s32.totalorder %s16, 0
    %p147 = por %p145, %p146
    %p148 = scmp.ne.s32.totalorder %s134, %s135
    %p149 = scmp.eq.s32.totalorder %s17, 3
    %p150 = por %p148, %p149
    %p152 = scmp.ne.s32.totalorder %s135, %s151
    %p153 = scmp.eq.s32.totalorder %s17, 0
    %p154 = por %p152, %p153
    %p155 = scmp.le.s32.totalorder 1, %s11
    %p156 = scmp.lt.s32.totalorder %s11, 5
    %p157 = pnand %p155, %p156
    %p158 = pneg %p157
    // Predicated region
    $region9: #{seghead_forward.5} parent=5 // pred_check
      _
    $region10: #{seghead_forward.5} parent=5 // pred_check_branch
      %160 = sbr.rel (%p157) target = $region12
    $region11: #{seghead_forward.5} parent=5 // pred_region
      %s161 = ssub.s32 %s11, 1
      // Predicated region
      $region13: #{seghead_forward.5} parent=11 // pred_check
        %p162 = pneg %p32
      $region14: #{seghead_forward.5} parent=11 // pred_check_branch
        %164 = sbr.rel (%p162) target = $region16
      $region15: #{seghead_forward.5} parent=11 // pred_region
        _
      $region16: #{seghead_forward.5} parent=11 // pred_fallthru
        _
      // Predicated region
      $region17: #{seghead_forward.5} parent=11 // pred_check
        %p165 = pneg %p53
      $region18: #{seghead_forward.5} parent=11 // pred_check_branch
        %167 = sbr.rel (%p165) target = $region20
      $region19: #{seghead_forward.5} parent=11 // pred_region
        _
      $region20: #{seghead_forward.5} parent=11 // pred_fallthru
        _
      // Predicated region
      $region21: #{seghead_forward.5} parent=11 // pred_check
        %p168 = pneg %p74
      $region22: #{seghead_forward.5} parent=11 // pred_check_branch
        %170 = sbr.rel (%p168) target = $region24
      $region23: #{seghead_forward.5} parent=11 // pred_region
        _
      $region24: #{seghead_forward.5} parent=11 // pred_fallthru
        _
      // Predicated region
      $region25: #{seghead_forward.5} parent=11 // pred_check
        %p171 = pneg %p95
      $region26: #{seghead_forward.5} parent=11 // pred_check_branch
        %173 = sbr.rel (%p171) target = $region28
      $region27: #{seghead_forward.5} parent=11 // pred_region
        _
      $region28: #{seghead_forward.5} parent=11 // pred_fallthru
        _
    $region12: #{seghead_forward.5} parent=5 // pred_fallthru
      _
    %p174 = scmp.lt.s32.totalorder %s11, 4
    // Predicated region
    $region29: #{seghead_forward.5} parent=5 // pred_check
      %p175 = pneg %p174
    $region30: #{seghead_forward.5} parent=5 // pred_check_branch
      %177 = sbr.rel (%p175) target = $region32
    $region31: #{seghead_forward.5} parent=5 // pred_region
      // Predicated region
      $region33: #{seghead_forward.5} parent=31 // pred_check
        %p178 = pneg %p115
      $region34: #{seghead_forward.5} parent=31 // pred_check_branch
        %180 = sbr.rel (%p178) target = $region36
      $region35: #{seghead_forward.5} parent=31 // pred_region
        %s181 = smul.u32 2, %s11
        %p182 = scmp.lt.s32.totalorder %s181, 7
        %s183 = scalar_select %p182, %s181, 7
        %s184 = smul.addr %s183, 8
        %s185 = scalar_lea.vmem %s4, %s184
        %s186 = smul.u32 2, %s11
      $region36: #{seghead_forward.5} parent=31 // pred_fallthru
        _
    $region32: #{seghead_forward.5} parent=5 // pred_fallthru
      _
    %p187 = scmp.le.s32.totalorder 1, %s11
    %p188 = scmp.lt.s32.totalorder %s11, 5
    %p189 = pnand %p187, %p188
    %p190 = pneg %p189
    // Predicated region
    $region37: #{seghead_forward.5} parent=5 // pred_check
      _
    $region38: #{seghead_forward.5} parent=5 // pred_check_branch
      %192 = sbr.rel (%p189) target = $region40
    $region39: #{seghead_forward.5} parent=5 // pred_region
      %s193 = ssub.s32 %s11, 1
      %p194 = pneg %p32
      %p195 = pneg %p29
      %p196 = pneg %p53
      %p197 = pneg %p50
      %p198 = pneg %p74
      %p199 = pneg %p71
      %p200 = pneg %p95
      %p201 = pneg %p92
      %s202 = smul.u32 2, %s16
      %p203 = scmp.lt.s32.totalorder %s202, 7
      %s204 = scalar_select %p203, %s202, 7
      %s205 = smul.addr %s204, 8
      %s206 = scalar_lea.vmem %s4, %s205
      %p207 = pneg %p121
      %p208 = pneg %p118
      %p209 = pneg %p147
      %p210 = pneg %p144
      %s211 = smul.u32 2, %s16
      %p212 = scmp.lt.s32.totalorder %s211, 7
      %s213 = scalar_select %p212, %s211, 7
      %s214 = smul.addr %s213, 8
      %s215 = scalar_lea.vmem %s5, %s214
      %s216 = smul.u32 2, %s16
      %p217 = scmp.lt.s32.totalorder %s216, 7
      %s218 = scalar_select %p217, %s216, 7
      %s219 = smul.addr %s218, 8
      %s220 = scalar_lea.vmem %s4, %s219
      %s221 = smul.u32 2, %s16
      %s222 = smul.u32 2, %s16
      %p223 = scmp.lt.s32.totalorder %s222, 7
      %s224 = scalar_select %p223, %s222, 7
      %s225 = smul.addr %s224, 8
      %s226 = scalar_lea.vmem %s5, %s225
      %s227 = smul.u32 2, %s16
      %v228 = vld [vmem:[%s220] sm:$0xff]
      %v229 = vld [vmem:[%s220 + $0x8] sm:$0xff]
      %v230 = vld [vmem:[%s0] sm:$0xff]
      %232 = vset.pattern.permute.xlu0 0
      %233 = vperm.xlu0 %232, %v230
      %v234 = vpop.permute.xlu0 %233
      %v236 = vmul.f32 %v228, %v234
      %v237 = vmul.f32 %v229, %v234
      %v238 = vld [vmem:[%s1] sm:$0xff]
      %240 = vset.pattern.permute.xlu0 0
      %241 = vperm.xlu0 %240, %v238
      %v242 = vpop.permute.xlu0 %241
      %v244 = vadd.f32 %v236, %v242
      %v245 = vadd.f32 %v237, %v242
      %v246 = vmul.f32 %v244, 0.5
      %v247 = vmul.f32 %v245, 0.5
      %v248 = vtanh.pop %v246
      %v249 = vtanh.pop %v247
      %vm250 = vcmp.gt.f32.partialorder %v244, 0.0
      %vm251 = vcmp.gt.f32.partialorder %v245, 0.0
      %v252 = vmul.f32 %v248, 2.0
      %v253 = vmul.f32 %v249, 2.0
      %v254 = vsub.f32 1.0, %v248
      %v255 = vsub.f32 1.0, %v249
      %v256 = vrcp.pop %v254
      %v257 = vmul.f32 %v252, %v256
      %v258 = vrcp.pop %v255
      %v259 = vmul.f32 %v253, %v258
      %v260 = vsel %vm250, %v244, %v257
      %v261 = vsel %vm251, %v245, %v259
      %v262 = vld [vmem:[%s2] sm:$0xff]
      %v263 = vld [vmem:[%s3] sm:$0xff]
      %265 = vset.pattern.permute.xlu0 0
      %266 = vperm.xlu0 %265, %v263
      %v267 = vpop.permute.xlu0 %266
      %vm269 = vcmask 64512
      %v271 = vsel %vm269, %v262, 0
      %273 = vmatprep.subr.mxu0 %v261
      %274 = vmatpush1.msra.mxu0 %v260
      %275 = vmatprep.subr.mxu0 0.0
      %276 = vmatpush1.msra.mxu0 0.0
      %277 = vmatprep.subr.mxu0 0.0
      %278 = vmatpush1.msra.mxu0 0.0
      %279 = vmatprep.subr.mxu0 0.0
      %280 = vmatpush1.msra.mxu0 0.0
      %281 = vmatprep.subr.mxu0 0.0
      %282 = vmatpush1.msra.mxu0 0.0
      %283 = vmatprep.subr.mxu0 0.0
      %284 = vmatpush1.msra.mxu0 0.0
      %285 = vmatprep.subr.mxu0 0.0
      %286 = vmatpush1.msra.mxu0 0.0
      %287 = vmatprep.subr.mxu0 0.0
      %288 = vmatpush1.msra.mxu0 0.0
      %289 = vmatprep.subr.mxu0 0.0
      %290 = vmatpush1.msra.mxu0 0.0
      %291 = vmatprep.subr.mxu0 0.0
      %292 = vmatpush1.msra.mxu0 0.0
      %293 = vmatprep.subr.mxu0 0.0
      %294 = vmatpush1.msra.mxu0 0.0
      %295 = vmatprep.subr.mxu0 0.0
      %296 = vmatpush1.msra.mxu0 0.0
      %297 = vmatprep.subr.mxu0 0.0
      %298 = vmatpush1.msra.mxu0 0.0
      %299 = vmatprep.subr.mxu0 0.0
      %300 = vmatpush1.msra.mxu0 0.0
      %301 = vmatprep.subr.mxu0 0.0
      %302 = vmatpush1.msra.mxu0 0.0
      %303 = vmatprep.subr.mxu0 0.0
      %304 = vmatpush1.msra.mxu0 0.0
      %305 = vmatprep.subr.mxu0 0.0
      %306 = vmatpush1.msra.mxu0 0.0
      %307 = vmatprep.subr.mxu0 0.0
      %308 = vmatpush1.msra.mxu0 0.0
      %309 = vmatprep.subr.mxu0 0.0
      %310 = vmatpush1.msra.mxu0 0.0
      %311 = vmatprep.subr.mxu0 0.0
      %312 = vmatpush1.msra.mxu0 0.0
      %313 = vmatprep.subr.mxu0 0.0
      %314 = vmatpush1.msra.mxu0 0.0
      %315 = vmatprep.subr.mxu0 0.0
      %316 = vmatpush1.msra.mxu0 0.0
      %317 = vmatprep.subr.mxu0 0.0
      %318 = vmatpush1.msra.mxu0 0.0
      %319 = vmatprep.subr.mxu0 0.0
      %320 = vmatpush1.msra.mxu0 0.0
      %321 = vmatprep.subr.mxu0 0.0
      %322 = vmatpush1.msra.mxu0 0.0
      %323 = vmatprep.subr.mxu0 0.0
      %324 = vmatpush1.msra.mxu0 0.0
      %325 = vmatprep.subr.mxu0 0.0
      %326 = vmatpush1.msra.mxu0 0.0
      %327 = vmatprep.subr.mxu0 0.0
      %328 = vmatpush1.msra.mxu0 0.0
      %329 = vmatprep.subr.mxu0 0.0
      %330 = vmatpush1.msra.mxu0 0.0
      %331 = vmatprep.subr.mxu0 0.0
      %332 = vmatpush1.msra.mxu0 0.0
      %333 = vmatprep.subr.mxu0 0.0
      %334 = vmatpush1.msra.mxu0 0.0
      %335 = vmatprep.subr.mxu0 0.0
      %336 = vmatpush1.msra.mxu0 0.0
      %337 = vmatprep.mubr.f32.mxu0 0.0
      %338 = vmatmul.mubr.f32.gmra.mrb[0].mxu0 %v271
      %v339 = vpop.f32.mrb[0].mxu0
      %v340 = vadd.f32 %v267, %v339
      %v341 = vpop.f32.mrb[0].mxu0
      %v342 = vadd.f32 %v267, %v341
      %343 = vdwg.mxu0
      %v344 = vrot.slane %v340, 4
      %v345 = vmax.f32 %v340, %v344
      %v346 = vrot.slane %v345, 2
      %v347 = vmax.f32 %v345, %v346
      %v348 = vrot.slane %v347, 1
      %v349 = vmax.f32 %v347, %v348
      %v350 = vrot.slane %v342, 4
      %v351 = vmax.f32 %v342, %v350
      %v352 = vrot.slane %v351, 2
      %v353 = vmax.f32 %v351, %v352
      %v354 = vrot.slane %v353, 1
      %v355 = vmax.f32 %v353, %v354
      %v356 = vsub.f32 %v340, %v349
      %v357 = vsub.f32 %v342, %v355
      %v358 = vmul.f32 %v356, 1.442695
      %v359 = vpow.pop %v358
      %v360 = vmul.f32 %v357, 1.442695
      %v361 = vpow.pop %v360
      %v362 = vrot.slane %v359, 4
      %v363 = vadd.f32 %v359, %v362
      %v364 = vrot.slane %v363, 2
      %v365 = vadd.f32 %v363, %v364
      %v366 = vrot.slane %v365, 1
      %v367 = vadd.f32 %v365, %v366
      %v368 = vrot.slane %v361, 4
      %v369 = vadd.f32 %v361, %v368
      %v370 = vrot.slane %v369, 2
      %v371 = vadd.f32 %v369, %v370
      %v372 = vrot.slane %v371, 1
      %v373 = vadd.f32 %v371, %v372
      %v374 = vrcp.pop %v367
      %v375 = vmul.f32 %v359, %v374
      %v376 = vrcp.pop %v373
      %v377 = vmul.f32 %v361, %v376
      %378 = vst [vmem:[%s226] sm:$0xff] %v375
      %379 = vst [vmem:[%s226 + $0x8] sm:$0xff] %v377
      %s380 = smul.u32 2, %s16
      %p381 = scmp.lt.s32.totalorder %s380, 7
      %s382 = scalar_select %p381, %s380, 7
      %s383 = smul.addr %s382, 8
      %s384 = scalar_lea.vmem %s5, %s383
      // Predicated region
      $region41: #{seghead_forward.5} parent=39 // pred_check
        %p385 = pneg %p144
      $region42: #{seghead_forward.5} parent=39 // pred_check_branch
        %387 = sbr.rel (%p385) target = $region44
      $region43: #{seghead_forward.5} parent=39 // pred_region
        %s388 = smul.u32 2, %s16
      $region44: #{seghead_forward.5} parent=39 // pred_fallthru
        _
    $region40: #{seghead_forward.5} parent=5 // pred_fallthru
      _
    %p389 = scmp.le.s32.totalorder 2, %s11
    // Predicated region
    $region45: #{seghead_forward.5} parent=5 // pred_check
      %p390 = pneg %p389
    $region46: #{seghead_forward.5} parent=5 // pred_check_branch
      %392 = sbr.rel (%p390) target = $region48
    $region47: #{seghead_forward.5} parent=5 // pred_region
      %s393 = ssub.s32 %s11, 2
      // Predicated region
      $region49: #{seghead_forward.5} parent=47 // pred_check
        %p394 = pneg %p150
      $region50: #{seghead_forward.5} parent=47 // pred_check_branch
        %396 = sbr.rel (%p394) target = $region52
      $region51: #{seghead_forward.5} parent=47 // pred_region
        %s397 = smul.u32 2, %s17
        %p398 = scmp.lt.s32.totalorder %s397, 7
        %s399 = scalar_select %p398, %s397, 7
        %s400 = smul.addr %s399, 8
        %s401 = scalar_lea.vmem %s5, %s400
      $region52: #{seghead_forward.5} parent=47 // pred_fallthru
        _
    $region48: #{seghead_forward.5} parent=5 // pred_fallthru
      _
  $region6: #{seghead_forward.5} parent=0 // loop_footer
    %s15 = sadd.s32 1, %s11
  $region7: #{seghead_forward.5} parent=0 // loop_footer_branch
    %10 = sbr.rel target = $region3
  $region8: #{seghead_forward.5} parent=0 // loop_exit
    _

</llo_original>
